<compile_context>
chip_gen: v6e
topology: v6e:2x2x1
jax: 0.10.0
libtpu: 0.0.40
codegen_flags: <defaults>
</compile_context>

<pallas_src>
import jax
import jax.numpy as jnp
from jax import lax
from jax.experimental import pallas as pl
from jax.experimental.pallas import tpu as pltpu


def _fused_convpredictor_kernel(
    x_ref, sm1_ref, sp1_ref,
    w1_ref, b1_ref, g1_ref, d1_ref,
    w2_ref, b2_ref, g2_ref, d2_ref,
    w3_ref, b3_ref, g3_ref, d3_ref,
    wp_ref, bp_ref,
    out_ref,
    xs_ref,                      # VMEM scratch: im2col staging buffer (3*C0, T)
):
    """Fused ConvPredictor forward on one (C, T=B*L) block resident in VMEM.

    x_ref  : (C0, T)         input activations, channels-on-sublanes / time-on-lanes
    sm1_ref: (T, T)          selection matrix for clamped shift by -1 (replicate pad)
    sp1_ref: (T, T)          selection matrix for clamped shift by +1 (replicate pad)
    wi_ref : (C_out, 3*C_in) im2col-flattened conv weights, tap-major
    bi_ref : (C_out, 1)      conv bias
    gi_ref : (C_out, 1)      folded BN scale  (gamma / sqrt(var + eps))
    di_ref : (C_out, 1)      folded BN shift  (beta - mean * scale)
    wp_ref : (5, C3, 1)      predict conv weights, tap-major
    bp_ref : (1, 1)          predict conv bias
    out_ref: (1, T)
    """
    sm1 = sm1_ref[...]
    sp1 = sp1_ref[...]

    def shift(h, mat):
        # Exact replicate-padded shift within each length-L batch segment:
        # out[:, t] = h[:, clamp_segment(t + off)].  0/1 matrix -> exact on MXU.
        return jnp.dot(h, mat, preferred_element_type=jnp.float32)

    def conv_relu_bn(h, w_ref, b_ref, g_ref, d_ref):
        c = h.shape[0]
        # im2col: stack [off=-1 | off=0 | off=+1] along sublanes (aligned stores).
        xs_ref[0:c, :] = shift(h, sm1)
        xs_ref[c:2 * c, :] = h
        xs_ref[2 * c:3 * c, :] = shift(h, sp1)
        # Single MXU matmul per stage, contraction over 3*C_in.
        y = jnp.dot(w_ref[...], xs_ref[0:3 * c, :],
                    preferred_element_type=jnp.float32)
        y = y + b_ref[...]
        y = jnp.maximum(y, 0.0)                    # ReLU (spec: Conv -> ReLU -> BN)
        return y * g_ref[...] + d_ref[...]         # eval-mode BatchNorm1d

    h = x_ref[...]
    h = conv_relu_bn(h, w1_ref, b1_ref, g1_ref, d1_ref)
    h = conv_relu_bn(h, w2_ref, b2_ref, g2_ref, d2_ref)
    h = conv_relu_bn(h, w3_ref, b3_ref, g3_ref, d3_ref)

    # Predict stage (C_out = 1, K = 5): VPU multiply-accumulate epilogue.
    # Clamped shift by +/-2 == clamped shift by +/-1 applied twice.
    sp1h = shift(h, sp1)
    sp2h = shift(sp1h, sp1)
    sm1h = shift(h, sm1)
    sm2h = shift(sm1h, sm1)
    taps = (sm2h, sm1h, h, sp1h, sp2h)             # offsets -2..+2 == taps k = 0..4
    acc = taps[0] * wp_ref[0]                      # (C3, T) * (C3, 1)
    for k in range(1, 5):
        acc = acc + taps[k] * wp_ref[k]
    out = jnp.sum(acc, axis=0, keepdims=True) + bp_ref[...]     # (1, T)
    out_ref[...] = out.astype(out_ref.dtype)


def _shift_matrices(B, L):
    """(T, T) 0/1 matrices S with (h @ S)[:, t] == h[:, seg(t) + clip(pos(t)+off, 0, L-1)].

    They encode PyTorch's replicate ('edge') padding per batch segment, so no padded
    HBM array and no in-kernel boundary select is needed.
    """
    T = B * L
    t = jnp.arange(T)
    seg = (t // L) * L
    pos = t % L

    def mat(off):
        src = seg + jnp.clip(pos + off, 0, L - 1)
        return (jnp.arange(T)[:, None] == src[None, :]).astype(jnp.float32)

    return mat(-1), mat(1)


def conv_predictor_forward(x, params):
    """x: (B, L, d_model) -> (B, L), mirroring ConvPredictor.forward."""
    B, L, C0 = x.shape
    T = B * L
    # x.permute(0, 2, 1) + batch flattening onto lanes: (C0, B*L).
    xt = jnp.transpose(x, (2, 0, 1)).reshape(C0, T).astype(jnp.float32)
    sm1, sp1 = _shift_matrices(B, L)

    args = [xt, sm1, sp1]
    for i in range(3):
        p = params[f"conv_bn{i + 1}"]
        co, ci, K = p["w"].shape
        # Wf[co, k*C_in + ci] = w[co, ci, k]  (matches im2col row order in the kernel).
        wf = jnp.transpose(p["w"], (0, 2, 1)).reshape(co, K * ci).astype(jnp.float32)
        args += [
            wf,
            p["b"].reshape(co, 1).astype(jnp.float32),
            p["scale"].reshape(co, 1).astype(jnp.float32),
            p["shift"].reshape(co, 1).astype(jnp.float32),
        ]
    pp = params["predict"]
    wp = jnp.transpose(pp["w"], (2, 1, 0)).astype(jnp.float32)   # (5, C3, 1)
    bp = pp["b"].reshape(1, 1).astype(jnp.float32)
    args += [wp, bp]

    out_flat = pl.pallas_call(
        _fused_convpredictor_kernel,
        out_shape=jax.ShapeDtypeStruct((1, T), jnp.float32),
        scratch_shapes=[pltpu.VMEM((3 * C0, T), jnp.float32)],
    )(*args)

    # (1, B*L) -> (B, L).  PyTorch's trailing .squeeze() on (B, L, 1) also yields
    # (B, L) for B > 1 (and would additionally drop the batch dim when B == 1).
    return out_flat.reshape(B, L)


def init_params(key, d_model):
    """Deterministic synthetic parameters matching ConvPredictor(d_model)."""
    dims = [d_model, d_model // 2, d_model // 4, d_model // 8]
    eps = 1e-5
    params = {}
    keys = jax.random.split(key, 8)
    for i in range(3):
        cin, cout = dims[i], dims[i + 1]
        w = 0.1 * jax.random.normal(keys[2 * i], (cout, cin, 3), jnp.float32)
        b = 0.1 * jax.random.normal(keys[2 * i + 1], (cout,), jnp.float32)
        gamma = 1.0 + 0.01 * jnp.arange(cout, dtype=jnp.float32)
        beta = 0.01 * jnp.arange(cout, dtype=jnp.float32)
        rmean = 0.05 * jnp.arange(cout, dtype=jnp.float32)
        rvar = 1.0 + 0.02 * jnp.arange(cout, dtype=jnp.float32)
        scl = gamma / jnp.sqrt(rvar + eps)
        params[f"conv_bn{i + 1}"] = dict(w=w, b=b, scale=scl, shift=beta - rmean * scl)
    params["predict"] = dict(
        w=0.1 * jax.random.normal(keys[6], (1, dims[3], 5), jnp.float32),
        b=0.1 * jax.random.normal(keys[7], (1,), jnp.float32),
    )
    return params


# ---- pure-JAX reference (for correctness check only) ----------------------
def _ref_conv_bn(x, w, b, scale, shift):
    pad = w.shape[-1] // 2
    xpad = jnp.pad(x, ((0, 0), (0, 0), (pad, pad)), mode="edge")
    y = lax.conv_general_dilated(xpad, w, window_strides=(1,), padding="VALID",
                                 dimension_numbers=("NCW", "OIW", "NCW"))
    y = y + b[None, :, None]
    y = jnp.maximum(y, 0.0)
    return y * scale[None, :, None] + shift[None, :, None]


def conv_predictor_reference(x, params):
    h = jnp.transpose(x, (0, 2, 1))
    for i in range(3):
        p = params[f"conv_bn{i + 1}"]
        h = _ref_conv_bn(h, p["w"], p["b"], p["scale"], p["shift"])
    pp = params["predict"]
    pad = pp["w"].shape[-1] // 2
    hpad = jnp.pad(h, ((0, 0), (0, 0), (pad, pad)), mode="edge")
    y = lax.conv_general_dilated(hpad, pp["w"], window_strides=(1,), padding="VALID",
                                 dimension_numbers=("NCW", "OIW", "NCW"))
    y = y + pp["b"][None, :, None]
    return jnp.transpose(y, (0, 2, 1))[..., 0]      # (B, L)


if __name__ == "__main__":
    B, L, d_model = 2, 16, 32
    key = jax.random.PRNGKey(0)
    kx, kp = jax.random.split(key)
    x = jax.random.normal(kx, (B, L, d_model), jnp.float32)
    params = init_params(kp, d_model)

    out = jax.block_until_ready(conv_predictor_forward(x, params))
    assert out.shape == (B, L), out.shape

    ref = jax.block_until_ready(conv_predictor_reference(x, params))
    assert jnp.allclose(out, ref, rtol=1e-4, atol=1e-4), \
        float(jnp.max(jnp.abs(out - ref)))

    print("KERNEL_OK")
</pallas_src>

<mosaic_0001>
module attributes {stable_mosaic.version = 11 : i64} {
  func.func @_fused_convpredictor_kernel(%arg0: memref<32x32xf32, #tpu.memory_space<vmem>>, %arg1: memref<32x32xf32, #tpu.memory_space<vmem>>, %arg2: memref<32x32xf32, #tpu.memory_space<vmem>>, %arg3: memref<16x96xf32, #tpu.memory_space<vmem>>, %arg4: memref<16x1xf32, #tpu.memory_space<vmem>>, %arg5: memref<16x1xf32, #tpu.memory_space<vmem>>, %arg6: memref<16x1xf32, #tpu.memory_space<vmem>>, %arg7: memref<8x48xf32, #tpu.memory_space<vmem>>, %arg8: memref<8x1xf32, #tpu.memory_space<vmem>>, %arg9: memref<8x1xf32, #tpu.memory_space<vmem>>, %arg10: memref<8x1xf32, #tpu.memory_space<vmem>>, %arg11: memref<4x24xf32, #tpu.memory_space<vmem>>, %arg12: memref<4x1xf32, #tpu.memory_space<vmem>>, %arg13: memref<4x1xf32, #tpu.memory_space<vmem>>, %arg14: memref<4x1xf32, #tpu.memory_space<vmem>>, %arg15: memref<5x4x1xf32, #tpu.memory_space<vmem>>, %arg16: memref<1x1xf32, #tpu.memory_space<vmem>>, %arg17: memref<1x32xf32, #tpu.memory_space<vmem>>, %arg18: memref<96x32xf32, #tpu.memory_space<vmem>>) attributes {dimension_semantics = [], scalar_prefetch = 0 : i64, scratch_operands = 1 : i64, tpu.core_type = #tpu.core_type<tc>} {
    %c0 = arith.constant 0 : index
    %c0_0 = arith.constant 0 : index
    %0 = vector.load %arg1[%c0, %c0_0] : memref<32x32xf32, #tpu.memory_space<vmem>>, vector<32x32xf32>
    %c0_1 = arith.constant 0 : index
    %c0_2 = arith.constant 0 : index
    %1 = vector.load %arg2[%c0_1, %c0_2] : memref<32x32xf32, #tpu.memory_space<vmem>>, vector<32x32xf32>
    %c0_3 = arith.constant 0 : index
    %c0_4 = arith.constant 0 : index
    %2 = vector.load %arg0[%c0_3, %c0_4] : memref<32x32xf32, #tpu.memory_space<vmem>>, vector<32x32xf32>
    %cst = arith.constant dense<0.000000e+00> : vector<32x32xf32>
    %3 = tpu.matmul %2, %0, %cst {dimension_numbers = #tpu.dot_dimension_numbers<[1], [0], [0], [1], [0, 0, 1, 1], [], []>} : vector<32x32xf32>, vector<32x32xf32>, vector<32x32xf32> -> vector<32x32xf32>
    %c0_5 = arith.constant 0 : index
    %c0_6 = arith.constant 0 : index
    %4 = vector.load %arg18[%c0_5, %c0_6] : memref<96x32xf32, #tpu.memory_space<vmem>>, vector<32x32xf32>
    tpu.vector_store %arg18[%c0_5, %c0_6], %3 {strides = array<i32>} : memref<96x32xf32, #tpu.memory_space<vmem>>, vector<32x32xf32>,
    %c32 = arith.constant 32 : index
    %c0_7 = arith.constant 0 : index
    %5 = vector.load %arg18[%c32, %c0_7] : memref<96x32xf32, #tpu.memory_space<vmem>>, vector<32x32xf32>
    tpu.vector_store %arg18[%c32, %c0_7], %2 {strides = array<i32>} : memref<96x32xf32, #tpu.memory_space<vmem>>, vector<32x32xf32>,
    %cst_8 = arith.constant dense<0.000000e+00> : vector<32x32xf32>
    %6 = tpu.matmul %2, %1, %cst_8 {dimension_numbers = #tpu.dot_dimension_numbers<[1], [0], [0], [1], [0, 0, 1, 1], [], []>} : vector<32x32xf32>, vector<32x32xf32>, vector<32x32xf32> -> vector<32x32xf32>
    %c64 = arith.constant 64 : index
    %c0_9 = arith.constant 0 : index
    %7 = vector.load %arg18[%c64, %c0_9] : memref<96x32xf32, #tpu.memory_space<vmem>>, vector<32x32xf32>
    tpu.vector_store %arg18[%c64, %c0_9], %6 {strides = array<i32>} : memref<96x32xf32, #tpu.memory_space<vmem>>, vector<32x32xf32>,
    %c0_10 = arith.constant 0 : index
    %c0_11 = arith.constant 0 : index
    %8 = vector.load %arg3[%c0_10, %c0_11] : memref<16x96xf32, #tpu.memory_space<vmem>>, vector<16x96xf32>
    %c0_12 = arith.constant 0 : index
    %c0_13 = arith.constant 0 : index
    %9 = vector.load %arg18[%c0_12, %c0_13] : memref<96x32xf32, #tpu.memory_space<vmem>>, vector<96x32xf32>
    %cst_14 = arith.constant dense<0.000000e+00> : vector<16x32xf32>
    %10 = tpu.matmul %8, %9, %cst_14 {dimension_numbers = #tpu.dot_dimension_numbers<[1], [0], [0], [1], [0, 0, 1, 1], [], []>} : vector<16x96xf32>, vector<96x32xf32>, vector<16x32xf32> -> vector<16x32xf32>
    %c0_15 = arith.constant 0 : index
    %c0_16 = arith.constant 0 : index
    %11 = vector.load %arg4[%c0_15, %c0_16] : memref<16x1xf32, #tpu.memory_space<vmem>>, vector<16x1xf32>
    %12 = vector.broadcast %11 : vector<16x1xf32> to vector<16x32xf32>
    %13 = arith.addf %10, %12 : vector<16x32xf32>
    %cst_17 = arith.constant 0.000000e+00 : f32
    %14 = vector.broadcast %cst_17 : f32 to vector<16x32xf32>
    %15 = arith.maximumf %13, %14 : vector<16x32xf32>
    %c0_18 = arith.constant 0 : index
    %c0_19 = arith.constant 0 : index
    %16 = vector.load %arg5[%c0_18, %c0_19] : memref<16x1xf32, #tpu.memory_space<vmem>>, vector<16x1xf32>
    %17 = vector.broadcast %16 : vector<16x1xf32> to vector<16x32xf32>
    %18 = arith.mulf %15, %17 : vector<16x32xf32>
    %c0_20 = arith.constant 0 : index
    %c0_21 = arith.constant 0 : index
    %19 = vector.load %arg6[%c0_20, %c0_21] : memref<16x1xf32, #tpu.memory_space<vmem>>, vector<16x1xf32>
    %20 = vector.broadcast %19 : vector<16x1xf32> to vector<16x32xf32>
    %21 = arith.addf %18, %20 : vector<16x32xf32>
    %cst_22 = arith.constant dense<0.000000e+00> : vector<16x32xf32>
    %22 = tpu.matmul %21, %0, %cst_22 {dimension_numbers = #tpu.dot_dimension_numbers<[1], [0], [0], [1], [0, 0, 1, 1], [], []>} : vector<16x32xf32>, vector<32x32xf32>, vector<16x32xf32> -> vector<16x32xf32>
    %c0_23 = arith.constant 0 : index
    %c0_24 = arith.constant 0 : index
    %23 = vector.load %arg18[%c0_23, %c0_24] : memref<96x32xf32, #tpu.memory_space<vmem>>, vector<16x32xf32>
    tpu.vector_store %arg18[%c0_23, %c0_24], %22 {strides = array<i32>} : memref<96x32xf32, #tpu.memory_space<vmem>>, vector<16x32xf32>,
    %c16 = arith.constant 16 : index
    %c0_25 = arith.constant 0 : index
    %24 = vector.load %arg18[%c16, %c0_25] : memref<96x32xf32, #tpu.memory_space<vmem>>, vector<16x32xf32>
    tpu.vector_store %arg18[%c16, %c0_25], %21 {strides = array<i32>} : memref<96x32xf32, #tpu.memory_space<vmem>>, vector<16x32xf32>,
    %cst_26 = arith.constant dense<0.000000e+00> : vector<16x32xf32>
    %25 = tpu.matmul %21, %1, %cst_26 {dimension_numbers = #tpu.dot_dimension_numbers<[1], [0], [0], [1], [0, 0, 1, 1], [], []>} : vector<16x32xf32>, vector<32x32xf32>, vector<16x32xf32> -> vector<16x32xf32>
    %c32_27 = arith.constant 32 : index
    %c0_28 = arith.constant 0 : index
    %26 = vector.load %arg18[%c32_27, %c0_28] : memref<96x32xf32, #tpu.memory_space<vmem>>, vector<16x32xf32>
    tpu.vector_store %arg18[%c32_27, %c0_28], %25 {strides = array<i32>} : memref<96x32xf32, #tpu.memory_space<vmem>>, vector<16x32xf32>,
    %c0_29 = arith.constant 0 : index
    %c0_30 = arith.constant 0 : index
    %27 = vector.load %arg7[%c0_29, %c0_30] : memref<8x48xf32, #tpu.memory_space<vmem>>, vector<8x48xf32>
    %c0_31 = arith.constant 0 : index
    %c0_32 = arith.constant 0 : index
    %28 = vector.load %arg18[%c0_31, %c0_32] : memref<96x32xf32, #tpu.memory_space<vmem>>, vector<48x32xf32>
    %cst_33 = arith.constant dense<0.000000e+00> : vector<8x32xf32>
    %29 = tpu.matmul %27, %28, %cst_33 {dimension_numbers = #tpu.dot_dimension_numbers<[1], [0], [0], [1], [0, 0, 1, 1], [], []>} : vector<8x48xf32>, vector<48x32xf32>, vector<8x32xf32> -> vector<8x32xf32>
    %c0_34 = arith.constant 0 : index
    %c0_35 = arith.constant 0 : index
    %30 = vector.load %arg8[%c0_34, %c0_35] : memref<8x1xf32, #tpu.memory_space<vmem>>, vector<8x1xf32>
    %31 = vector.broadcast %30 : vector<8x1xf32> to vector<8x32xf32>
    %32 = arith.addf %29, %31 : vector<8x32xf32>
    %cst_36 = arith.constant 0.000000e+00 : f32
    %33 = vector.broadcast %cst_36 : f32 to vector<8x32xf32>
    %34 = arith.maximumf %32, %33 : vector<8x32xf32>
    %c0_37 = arith.constant 0 : index
    %c0_38 = arith.constant 0 : index
    %35 = vector.load %arg9[%c0_37, %c0_38] : memref<8x1xf32, #tpu.memory_space<vmem>>, vector<8x1xf32>
    %36 = vector.broadcast %35 : vector<8x1xf32> to vector<8x32xf32>
    %37 = arith.mulf %34, %36 : vector<8x32xf32>
    %c0_39 = arith.constant 0 : index
    %c0_40 = arith.constant 0 : index
    %38 = vector.load %arg10[%c0_39, %c0_40] : memref<8x1xf32, #tpu.memory_space<vmem>>, vector<8x1xf32>
    %39 = vector.broadcast %38 : vector<8x1xf32> to vector<8x32xf32>
    %40 = arith.addf %37, %39 : vector<8x32xf32>
    %cst_41 = arith.constant dense<0.000000e+00> : vector<8x32xf32>
    %41 = tpu.matmul %40, %0, %cst_41 {dimension_numbers = #tpu.dot_dimension_numbers<[1], [0], [0], [1], [0, 0, 1, 1], [], []>} : vector<8x32xf32>, vector<32x32xf32>, vector<8x32xf32> -> vector<8x32xf32>
    %c0_42 = arith.constant 0 : index
    %c0_43 = arith.constant 0 : index
    %42 = vector.load %arg18[%c0_42, %c0_43] : memref<96x32xf32, #tpu.memory_space<vmem>>, vector<8x32xf32>
    tpu.vector_store %arg18[%c0_42, %c0_43], %41 {strides = array<i32>} : memref<96x32xf32, #tpu.memory_space<vmem>>, vector<8x32xf32>,
    %c8 = arith.constant 8 : index
    %c0_44 = arith.constant 0 : index
    %43 = vector.load %arg18[%c8, %c0_44] : memref<96x32xf32, #tpu.memory_space<vmem>>, vector<8x32xf32>
    tpu.vector_store %arg18[%c8, %c0_44], %40 {strides = array<i32>} : memref<96x32xf32, #tpu.memory_space<vmem>>, vector<8x32xf32>,
    %cst_45 = arith.constant dense<0.000000e+00> : vector<8x32xf32>
    %44 = tpu.matmul %40, %1, %cst_45 {dimension_numbers = #tpu.dot_dimension_numbers<[1], [0], [0], [1], [0, 0, 1, 1], [], []>} : vector<8x32xf32>, vector<32x32xf32>, vector<8x32xf32> -> vector<8x32xf32>
    %c16_46 = arith.constant 16 : index
    %c0_47 = arith.constant 0 : index
    %45 = vector.load %arg18[%c16_46, %c0_47] : memref<96x32xf32, #tpu.memory_space<vmem>>, vector<8x32xf32>
    tpu.vector_store %arg18[%c16_46, %c0_47], %44 {strides = array<i32>} : memref<96x32xf32, #tpu.memory_space<vmem>>, vector<8x32xf32>,
    %c0_48 = arith.constant 0 : index
    %c0_49 = arith.constant 0 : index
    %46 = vector.load %arg11[%c0_48, %c0_49] : memref<4x24xf32, #tpu.memory_space<vmem>>, vector<4x24xf32>
    %c0_50 = arith.constant 0 : index
    %c0_51 = arith.constant 0 : index
    %47 = vector.load %arg18[%c0_50, %c0_51] : memref<96x32xf32, #tpu.memory_space<vmem>>, vector<24x32xf32>
    %cst_52 = arith.constant dense<0.000000e+00> : vector<4x32xf32>
    %48 = tpu.matmul %46, %47, %cst_52 {dimension_numbers = #tpu.dot_dimension_numbers<[1], [0], [0], [1], [0, 0, 1, 1], [], []>} : vector<4x24xf32>, vector<24x32xf32>, vector<4x32xf32> -> vector<4x32xf32>
    %c0_53 = arith.constant 0 : index
    %c0_54 = arith.constant 0 : index
    %49 = vector.load %arg12[%c0_53, %c0_54] : memref<4x1xf32, #tpu.memory_space<vmem>>, vector<4x1xf32>
    %50 = vector.broadcast %49 : vector<4x1xf32> to vector<4x32xf32>
    %51 = arith.addf %48, %50 : vector<4x32xf32>
    %cst_55 = arith.constant 0.000000e+00 : f32
    %52 = vector.broadcast %cst_55 : f32 to vector<4x32xf32>
    %53 = arith.maximumf %51, %52 : vector<4x32xf32>
    %c0_56 = arith.constant 0 : index
    %c0_57 = arith.constant 0 : index
    %54 = vector.load %arg13[%c0_56, %c0_57] : memref<4x1xf32, #tpu.memory_space<vmem>>, vector<4x1xf32>
    %55 = vector.broadcast %54 : vector<4x1xf32> to vector<4x32xf32>
    %56 = arith.mulf %53, %55 : vector<4x32xf32>
    %c0_58 = arith.constant 0 : index
    %c0_59 = arith.constant 0 : index
    %57 = vector.load %arg14[%c0_58, %c0_59] : memref<4x1xf32, #tpu.memory_space<vmem>>, vector<4x1xf32>
    %58 = vector.broadcast %57 : vector<4x1xf32> to vector<4x32xf32>
    %59 = arith.addf %56, %58 : vector<4x32xf32>
    %cst_60 = arith.constant dense<0.000000e+00> : vector<4x32xf32>
    %60 = tpu.matmul %59, %1, %cst_60 {dimension_numbers = #tpu.dot_dimension_numbers<[1], [0], [0], [1], [0, 0, 1, 1], [], []>} : vector<4x32xf32>, vector<32x32xf32>, vector<4x32xf32> -> vector<4x32xf32>
    %cst_61 = arith.constant dense<0.000000e+00> : vector<4x32xf32>
    %61 = tpu.matmul %60, %1, %cst_61 {dimension_numbers = #tpu.dot_dimension_numbers<[1], [0], [0], [1], [0, 0, 1, 1], [], []>} : vector<4x32xf32>, vector<32x32xf32>, vector<4x32xf32> -> vector<4x32xf32>
    %cst_62 = arith.constant dense<0.000000e+00> : vector<4x32xf32>
    %62 = tpu.matmul %59, %0, %cst_62 {dimension_numbers = #tpu.dot_dimension_numbers<[1], [0], [0], [1], [0, 0, 1, 1], [], []>} : vector<4x32xf32>, vector<32x32xf32>, vector<4x32xf32> -> vector<4x32xf32>
    %cst_63 = arith.constant dense<0.000000e+00> : vector<4x32xf32>
    %63 = tpu.matmul %62, %0, %cst_63 {dimension_numbers = #tpu.dot_dimension_numbers<[1], [0], [0], [1], [0, 0, 1, 1], [], []>} : vector<4x32xf32>, vector<32x32xf32>, vector<4x32xf32> -> vector<4x32xf32>
    %c0_64 = arith.constant 0 : index
    %c0_65 = arith.constant 0 : index
    %c0_66 = arith.constant 0 : index
    %64 = vector.load %arg15[%c0_64, %c0_65, %c0_66] : memref<5x4x1xf32, #tpu.memory_space<vmem>>, vector<1x4x1xf32>
    %65 = vector.shape_cast %64 : vector<1x4x1xf32> to vector<4x1xf32>
    %66 = vector.broadcast %65 : vector<4x1xf32> to vector<4x32xf32>
    %67 = arith.mulf %63, %66 : vector<4x32xf32>
    %c1 = arith.constant 1 : index
    %c0_67 = arith.constant 0 : index
    %c0_68 = arith.constant 0 : index
    %68 = vector.load %arg15[%c1, %c0_67, %c0_68] : memref<5x4x1xf32, #tpu.memory_space<vmem>>, vector<1x4x1xf32>
    %69 = vector.shape_cast %68 : vector<1x4x1xf32> to vector<4x1xf32>
    %70 = vector.broadcast %69 : vector<4x1xf32> to vector<4x32xf32>
    %71 = arith.mulf %62, %70 : vector<4x32xf32>
    %72 = arith.addf %67, %71 : vector<4x32xf32>
    %c2 = arith.constant 2 : index
    %c0_69 = arith.constant 0 : index
    %c0_70 = arith.constant 0 : index
    %73 = vector.load %arg15[%c2, %c0_69, %c0_70] : memref<5x4x1xf32, #tpu.memory_space<vmem>>, vector<1x4x1xf32>
    %74 = vector.shape_cast %73 : vector<1x4x1xf32> to vector<4x1xf32>
    %75 = vector.broadcast %74 : vector<4x1xf32> to vector<4x32xf32>
    %76 = arith.mulf %59, %75 : vector<4x32xf32>
    %77 = arith.addf %72, %76 : vector<4x32xf32>
    %c3 = arith.constant 3 : index
    %c0_71 = arith.constant 0 : index
    %c0_72 = arith.constant 0 : index
    %78 = vector.load %arg15[%c3, %c0_71, %c0_72] : memref<5x4x1xf32, #tpu.memory_space<vmem>>, vector<1x4x1xf32>
    %79 = vector.shape_cast %78 : vector<1x4x1xf32> to vector<4x1xf32>
    %80 = vector.broadcast %79 : vector<4x1xf32> to vector<4x32xf32>
    %81 = arith.mulf %60, %80 : vector<4x32xf32>
    %82 = arith.addf %77, %81 : vector<4x32xf32>
    %c4 = arith.constant 4 : index
    %c0_73 = arith.constant 0 : index
    %c0_74 = arith.constant 0 : index
    %83 = vector.load %arg15[%c4, %c0_73, %c0_74] : memref<5x4x1xf32, #tpu.memory_space<vmem>>, vector<1x4x1xf32>
    %84 = vector.shape_cast %83 : vector<1x4x1xf32> to vector<4x1xf32>
    %85 = vector.broadcast %84 : vector<4x1xf32> to vector<4x32xf32>
    %86 = arith.mulf %61, %85 : vector<4x32xf32>
    %87 = arith.addf %82, %86 : vector<4x32xf32>
    %cst_75 = arith.constant dense<0.000000e+00> : vector<32xf32>
    %88 = vector.multi_reduction <add>, %87, %cst_75 [0] : vector<4x32xf32> to vector<32xf32>
    %89 = vector.shape_cast %88 : vector<32xf32> to vector<1x32xf32>
    %c0_76 = arith.constant 0 : index
    %c0_77 = arith.constant 0 : index
    %90 = vector.load %arg16[%c0_76, %c0_77] : memref<1x1xf32, #tpu.memory_space<vmem>>, vector<1x1xf32>
    %91 = vector.broadcast %90 : vector<1x1xf32> to vector<1x32xf32>
    %92 = arith.addf %89, %91 : vector<1x32xf32>
    %c0_78 = arith.constant 0 : index
    %c0_79 = arith.constant 0 : index
    %93 = vector.load %arg17[%c0_78, %c0_79] : memref<1x32xf32, #tpu.memory_space<vmem>>, vector<1x32xf32>
    tpu.vector_store %arg17[%c0_78, %c0_79], %92 {strides = array<i32>} : memref<1x32xf32, #tpu.memory_space<vmem>>, vector<1x32xf32>,
    return
  }
}

</mosaic_0001>

<llo_original>
// kernel: tpu_custom_call.1
$region0: #{tpu_custom_call.1}
  #allocation0 [shape = 'u32[]', space=smem, size = 0x4, offset = 0x4, fixed_abs, tag = 'smem constant byte address 0x4 - core index']
  #allocation1 [shape = 'u32[144,128]{1,0:T(1,128)}', space=vmem, size = 0x12000, scoped, tag = 'internal scratch']
  #allocation2 [shape = 'f32[96,32]{1,0:T(8,128)}', space=vmem, size = 0xc000, scoped, tag = 'scratch operand']
  #allocation3 [shape = 'f32[1,1]{1,0:T(1,128)S(1)}', space=vmem, size = 0x200, scoped, tag = 'scoped memory for tpu_custom_call.1']
  %s0 = inlined_call_operand.vmem [shape: f32[32,32], index: 0, kind: input, shape index: {}]
  %s1 = inlined_call_operand.vmem [shape: f32[32,32], index: 1, kind: input, shape index: {}]
  %s2 = inlined_call_operand.vmem [shape: f32[32,32], index: 2, kind: input, shape index: {}]
  %s3 = inlined_call_operand.vmem [shape: f32[16,96], index: 3, kind: input, shape index: {}]
  %s4 = inlined_call_operand.vmem [shape: f32[16,1], index: 4, kind: input, shape index: {}]
  %s5 = inlined_call_operand.vmem [shape: f32[16,1], index: 5, kind: input, shape index: {}]
  %s6 = inlined_call_operand.vmem [shape: f32[16,1], index: 6, kind: input, shape index: {}]
  %s7 = inlined_call_operand.vmem [shape: f32[8,48], index: 7, kind: input, shape index: {}]
  %s8 = inlined_call_operand.vmem [shape: f32[8,1], index: 8, kind: input, shape index: {}]
  %s9 = inlined_call_operand.vmem [shape: f32[8,1], index: 9, kind: input, shape index: {}]
  %s10 = inlined_call_operand.vmem [shape: f32[8,1], index: 10, kind: input, shape index: {}]
  %s11 = inlined_call_operand.vmem [shape: f32[4,24], index: 11, kind: input, shape index: {}]
  %s12 = inlined_call_operand.vmem [shape: f32[4,1], index: 12, kind: input, shape index: {}]
  %s13 = inlined_call_operand.vmem [shape: f32[4,1], index: 13, kind: input, shape index: {}]
  %s14 = inlined_call_operand.vmem [shape: f32[4,1], index: 14, kind: input, shape index: {}]
  %s15 = inlined_call_operand.vmem [shape: f32[5,4,1], index: 15, kind: input, shape index: {}]
  %s16 = inlined_call_operand.<no memory space> [shape: f32[1,1], index: 16, kind: input, shape index: {}]
  %s17 = inlined_call_operand.hbm [shape: f32[1,32], index: 17, kind: output, shape index: {}]
  %s18 = sld [smem:[#allocation0]]
  $region78: #{tpu_custom_call.1} parent=0
    _
  %s20 = ssub.s32 1, %s18
  %s21 = scalar_select 0, %s20, %s18
  %v22 = vstv %s16
  %23 = vst [vmem:[#allocation3] sm:$0x1] %v22
  $region1: #{tpu_custom_call.1} parent=0
    #allocation4 [shape = 'u8[512]{0}', space=vmem, size = 0x400, scoped, tag = 'output window, operand 0, single buffered']
    #allocation5 [shape = 's32[1]{0}', space=sflag, size = 0x4, scoped, tag = 'scoped memory for tpu_custom_call.1']
    %24 = vsyncpa [#allocation5], 0
    // Predicated region
    $region2: #{tpu_custom_call.1} parent=1 // pred_check
      _
    $region3: #{tpu_custom_call.1} parent=1 // pred_check_branch
      %26 = sbr.rel (0) target = $region5
    $region4: #{tpu_custom_call.1} parent=1 // pred_region
      _
    $region5: #{tpu_custom_call.1} parent=1 // pred_fallthru
      _
    // Predicated region
    $region6: #{tpu_custom_call.1} parent=1 // pred_check
      _
    $region7: #{tpu_custom_call.1} parent=1 // pred_check_branch
      %28 = sbr.rel (0) target = $region9
    $region8: #{tpu_custom_call.1} parent=1 // pred_region
      _
    $region9: #{tpu_custom_call.1} parent=1 // pred_fallthru
      _
    // Predicated region
    $region10: #{tpu_custom_call.1} parent=1 // pred_check
      _
    $region11: #{tpu_custom_call.1} parent=1 // pred_check_branch
      %30 = sbr.rel (0) target = $region13
    $region12: #{tpu_custom_call.1} parent=1 // pred_region
      _
    $region13: #{tpu_custom_call.1} parent=1 // pred_fallthru
      _
    // Predicated region
    $region14: #{tpu_custom_call.1} parent=1 // pred_check
      _
    $region15: #{tpu_custom_call.1} parent=1 // pred_check_branch
      %32 = sbr.rel (0) target = $region17
    $region16: #{tpu_custom_call.1} parent=1 // pred_region
      _
    $region17: #{tpu_custom_call.1} parent=1 // pred_fallthru
      _
    // Predicated region
    $region18: #{tpu_custom_call.1} parent=1 // pred_check
      _
    $region19: #{tpu_custom_call.1} parent=1 // pred_check_branch
      %34 = sbr.rel (0) target = $region21
    $region20: #{tpu_custom_call.1} parent=1 // pred_region
      _
    $region21: #{tpu_custom_call.1} parent=1 // pred_fallthru
      _
    // Predicated region
    $region22: #{tpu_custom_call.1} parent=1 // pred_check
      _
    $region23: #{tpu_custom_call.1} parent=1 // pred_check_branch
      %36 = sbr.rel (0) target = $region25
    $region24: #{tpu_custom_call.1} parent=1 // pred_region
      _
    $region25: #{tpu_custom_call.1} parent=1 // pred_fallthru
      _
    // Predicated region
    $region26: #{tpu_custom_call.1} parent=1 // pred_check
      _
    $region27: #{tpu_custom_call.1} parent=1 // pred_check_branch
      %38 = sbr.rel (0) target = $region29
    $region28: #{tpu_custom_call.1} parent=1 // pred_region
      _
    $region29: #{tpu_custom_call.1} parent=1 // pred_fallthru
      _
    // Predicated region
    $region30: #{tpu_custom_call.1} parent=1 // pred_check
      _
    $region31: #{tpu_custom_call.1} parent=1 // pred_check_branch
      %40 = sbr.rel (0) target = $region33
    $region32: #{tpu_custom_call.1} parent=1 // pred_region
      _
    $region33: #{tpu_custom_call.1} parent=1 // pred_fallthru
      _
    // Predicated region
    $region34: #{tpu_custom_call.1} parent=1 // pred_check
      _
    $region35: #{tpu_custom_call.1} parent=1 // pred_check_branch
      %42 = sbr.rel (0) target = $region37
    $region36: #{tpu_custom_call.1} parent=1 // pred_region
      _
    $region37: #{tpu_custom_call.1} parent=1 // pred_fallthru
      _
    // Predicated region
    $region38: #{tpu_custom_call.1} parent=1 // pred_check
      _
    $region39: #{tpu_custom_call.1} parent=1 // pred_check_branch
      %44 = sbr.rel (0) target = $region41
    $region40: #{tpu_custom_call.1} parent=1 // pred_region
      _
    $region41: #{tpu_custom_call.1} parent=1 // pred_fallthru
      _
    // Predicated region
    $region42: #{tpu_custom_call.1} parent=1 // pred_check
      _
    $region43: #{tpu_custom_call.1} parent=1 // pred_check_branch
      %46 = sbr.rel (0) target = $region45
    $region44: #{tpu_custom_call.1} parent=1 // pred_region
      _
    $region45: #{tpu_custom_call.1} parent=1 // pred_fallthru
      _
    // Predicated region
    $region46: #{tpu_custom_call.1} parent=1 // pred_check
      _
    $region47: #{tpu_custom_call.1} parent=1 // pred_check_branch
      %48 = sbr.rel (0) target = $region49
    $region48: #{tpu_custom_call.1} parent=1 // pred_region
      _
    $region49: #{tpu_custom_call.1} parent=1 // pred_fallthru
      _
    // Predicated region
    $region50: #{tpu_custom_call.1} parent=1 // pred_check
      _
    $region51: #{tpu_custom_call.1} parent=1 // pred_check_branch
      %50 = sbr.rel (0) target = $region53
    $region52: #{tpu_custom_call.1} parent=1 // pred_region
      _
    $region53: #{tpu_custom_call.1} parent=1 // pred_fallthru
      _
    // Predicated region
    $region54: #{tpu_custom_call.1} parent=1 // pred_check
      _
    $region55: #{tpu_custom_call.1} parent=1 // pred_check_branch
      %52 = sbr.rel (0) target = $region57
    $region56: #{tpu_custom_call.1} parent=1 // pred_region
      _
    $region57: #{tpu_custom_call.1} parent=1 // pred_fallthru
      _
    // Predicated region
    $region58: #{tpu_custom_call.1} parent=1 // pred_check
      _
    $region59: #{tpu_custom_call.1} parent=1 // pred_check_branch
      %54 = sbr.rel (0) target = $region61
    $region60: #{tpu_custom_call.1} parent=1 // pred_region
      _
    $region61: #{tpu_custom_call.1} parent=1 // pred_fallthru
      _
    // Predicated region
    $region62: #{tpu_custom_call.1} parent=1 // pred_check
      _
    $region63: #{tpu_custom_call.1} parent=1 // pred_check_branch
      %56 = sbr.rel (0) target = $region65
    $region64: #{tpu_custom_call.1} parent=1 // pred_region
      _
    $region65: #{tpu_custom_call.1} parent=1 // pred_fallthru
      _
    // Predicated region
    $region66: #{tpu_custom_call.1} parent=1 // pred_check
      _
    $region67: #{tpu_custom_call.1} parent=1 // pred_check_branch
      %58 = sbr.rel (0) target = $region69
    $region68: #{tpu_custom_call.1} parent=1 // pred_region
      _
    $region69: #{tpu_custom_call.1} parent=1 // pred_fallthru
      _
    %v59 = vld [vmem:[%s1] sm:$0xff]
    %v60 = vld [vmem:[%s1 + $0x8] sm:$0xff]
    %v61 = vld [vmem:[%s1 + $0x10] sm:$0xff]
    %v62 = vld [vmem:[%s1 + $0x18] sm:$0xff]
    %v63 = vld [vmem:[%s2] sm:$0xff]
    %v64 = vld [vmem:[%s2 + $0x8] sm:$0xff]
    %v65 = vld [vmem:[%s2 + $0x10] sm:$0xff]
    %v66 = vld [vmem:[%s2 + $0x18] sm:$0xff]
    %v67 = vld [vmem:[%s0] sm:$0xff]
    %v68 = vld [vmem:[%s0 + $0x8] sm:$0xff]
    %v69 = vld [vmem:[%s0 + $0x10] sm:$0xff]
    %v70 = vld [vmem:[%s0 + $0x18] sm:$0xff]
    %vm71 = vcmask 261120
    %v73 = vsel %vm71, %v67, 0
    %v76 = vsel %vm71, %v68, 0
    %v79 = vsel %vm71, %v69, 0
    %v82 = vsel %vm71, %v70, 0
    %84 = vmatprep.subr.mxu0 0.0
    %85 = vmatpush1.msra.mxu0 0.0
    %86 = vmatprep.subr.mxu0 0.0
    %87 = vmatpush1.msra.mxu0 0.0
    %88 = vmatprep.subr.mxu0 0.0
    %89 = vmatpush1.msra.mxu0 0.0
    %90 = vmatprep.subr.mxu0 0.0
    %91 = vmatpush1.msra.mxu0 0.0
    %92 = vmatprep.subr.mxu0 0.0
    %93 = vmatpush1.msra.mxu0 0.0
    %94 = vmatprep.subr.mxu0 0.0
    %95 = vmatpush1.msra.mxu0 0.0
    %96 = vmatprep.subr.mxu0 0.0
    %97 = vmatpush1.msra.mxu0 0.0
    %98 = vmatprep.subr.mxu0 0.0
    %99 = vmatpush1.msra.mxu0 0.0
    %100 = vmatprep.subr.mxu0 0.0
    %101 = vmatpush1.msra.mxu0 0.0
    %102 = vmatprep.subr.mxu0 0.0
    %103 = vmatpush1.msra.mxu0 0.0
    %104 = vmatprep.subr.mxu0 0.0
    %105 = vmatpush1.msra.mxu0 0.0
    %106 = vmatprep.subr.mxu0 0.0
    %107 = vmatpush1.msra.mxu0 0.0
    %108 = vmatprep.subr.mxu0 0.0
    %109 = vmatpush1.msra.mxu0 %v62
    %110 = vmatprep.subr.mxu0 0.0
    %111 = vmatpush1.msra.mxu0 %v61
    %112 = vmatprep.subr.mxu0 0.0
    %113 = vmatpush1.msra.mxu0 %v60
    %114 = vmatprep.subr.mxu0 0.0
    %115 = vmatpush1.msra.mxu0 %v59
    %116 = vmatprep.subr.mxu0 0.0
    %117 = vmatpush2.msra.mxu0 0.0
    %118 = vmatprep.subr.mxu0 0.0
    %119 = vmatpush2.msra.mxu0 0.0
    %120 = vmatprep.subr.mxu0 0.0
    %121 = vmatpush2.msra.mxu0 0.0
    %122 = vmatprep.subr.mxu0 0.0
    %123 = vmatpush2.msra.mxu0 0.0
    %124 = vmatprep.subr.mxu0 0.0
    %125 = vmatpush2.msra.mxu0 0.0
    %126 = vmatprep.subr.mxu0 0.0
    %127 = vmatpush2.msra.mxu0 0.0
    %128 = vmatprep.subr.mxu0 0.0
    %129 = vmatpush2.msra.mxu0 0.0
    %130 = vmatprep.subr.mxu0 0.0
    %131 = vmatpush2.msra.mxu0 0.0
    %132 = vmatprep.subr.mxu0 0.0
    %133 = vmatpush2.msra.mxu0 0.0
    %134 = vmatprep.subr.mxu0 0.0
    %135 = vmatpush2.msra.mxu0 0.0
    %136 = vmatprep.subr.mxu0 0.0
    %137 = vmatpush2.msra.mxu0 0.0
    %138 = vmatprep.subr.mxu0 0.0
    %139 = vmatpush2.msra.mxu0 0.0
    %140 = vmatprep.subr.mxu0 0.0
    %141 = vmatpush2.msra.mxu0 0.0
    %142 = vmatprep.subr.mxu0 0.0
    %143 = vmatpush2.msra.mxu0 0.0
    %144 = vmatprep.subr.mxu0 0.0
    %145 = vmatpush2.msra.mxu0 0.0
    %146 = vmatprep.subr.mxu0 0.0
    %147 = vmatpush2.msra.mxu0 0.0
    %148 = vmatprep.mubr.f32.mxu0 0.0
    %149 = vmatmul.mubr.f32.gmra.mxu0 %v73
    %v150 = vpop.f32.mrf.mxu0
    %v151 = vadd.f32 0.0, %v150
    %v152 = vpop.f32.mrf.mxu0
    %153 = vmatprep.mubr.f32.mxu0 0.0
    %154 = vmatmul.mubr.f32.gmra.mxu0 %v76
    %v155 = vpop.f32.mrf.mxu0
    %v156 = vadd.f32 0.0, %v155
    %v157 = vpop.f32.mrf.mxu0
    %158 = vmatprep.mubr.f32.mxu0 0.0
    %159 = vmatmul.mubr.f32.gmra.mxu0 %v79
    %v160 = vpop.f32.mrf.mxu0
    %v161 = vadd.f32 0.0, %v160
    %v162 = vpop.f32.mrf.mxu0
    %163 = vmatprep.mubr.f32.mxu0 0.0
    %164 = vmatmul.mubr.f32.gmra.mxu0 %v82
    %v165 = vpop.f32.mrf.mxu0
    %v166 = vadd.f32 0.0, %v165
    %v167 = vpop.f32.mrf.mxu0
    %168 = vdwg.mxu0
    %169 = vst.msk [vmem:[#allocation2] sm:$0xff] %vm71, %v151
    %170 = vst.msk [vmem:[#allocation2 + $0x8] sm:$0xff] %vm71, %v156
    %171 = vst.msk [vmem:[#allocation2 + $0x10] sm:$0xff] %vm71, %v161
    %172 = vst.msk [vmem:[#allocation2 + $0x18] sm:$0xff] %vm71, %v166
    %173 = vst.msk [vmem:[#allocation2 + $0x20] sm:$0xff] %vm71, %v67
    %174 = vst.msk [vmem:[#allocation2 + $0x28] sm:$0xff] %vm71, %v68
    %175 = vst.msk [vmem:[#allocation2 + $0x30] sm:$0xff] %vm71, %v69
    %176 = vst.msk [vmem:[#allocation2 + $0x38] sm:$0xff] %vm71, %v70
    %177 = vmatprep.subr.mxu0 0.0
    %178 = vmatpush1.msra.mxu0 0.0
    %179 = vmatprep.subr.mxu0 0.0
    %180 = vmatpush1.msra.mxu0 0.0
    %181 = vmatprep.subr.mxu0 0.0
    %182 = vmatpush1.msra.mxu0 0.0
    %183 = vmatprep.subr.mxu0 0.0
    %184 = vmatpush1.msra.mxu0 0.0
    %185 = vmatprep.subr.mxu0 0.0
    %186 = vmatpush1.msra.mxu0 0.0
    %187 = vmatprep.subr.mxu0 0.0
    %188 = vmatpush1.msra.mxu0 0.0
    %189 = vmatprep.subr.mxu0 0.0
    %190 = vmatpush1.msra.mxu0 0.0
    %191 = vmatprep.subr.mxu0 0.0
    %192 = vmatpush1.msra.mxu0 0.0
    %193 = vmatprep.subr.mxu0 0.0
    %194 = vmatpush1.msra.mxu0 0.0
    %195 = vmatprep.subr.mxu0 0.0
    %196 = vmatpush1.msra.mxu0 0.0
    %197 = vmatprep.subr.mxu0 0.0
    %198 = vmatpush1.msra.mxu0 0.0
    %199 = vmatprep.subr.mxu0 0.0
    %200 = vmatpush1.msra.mxu0 0.0
    %201 = vmatprep.subr.mxu0 0.0
    %202 = vmatpush1.msra.mxu0 %v66
    %203 = vmatprep.subr.mxu0 0.0
    %204 = vmatpush1.msra.mxu0 %v65
    %205 = vmatprep.subr.mxu0 0.0
    %206 = vmatpush1.msra.mxu0 %v64
    %207 = vmatprep.subr.mxu0 0.0
    %208 = vmatpush1.msra.mxu0 %v63
    %209 = vmatprep.subr.mxu0 0.0
    %210 = vmatpush2.msra.mxu0 0.0
    %211 = vmatprep.subr.mxu0 0.0
    %212 = vmatpush2.msra.mxu0 0.0
    %213 = vmatprep.subr.mxu0 0.0
    %214 = vmatpush2.msra.mxu0 0.0
    %215 = vmatprep.subr.mxu0 0.0
    %216 = vmatpush2.msra.mxu0 0.0
    %217 = vmatprep.subr.mxu0 0.0
    %218 = vmatpush2.msra.mxu0 0.0
    %219 = vmatprep.subr.mxu0 0.0
    %220 = vmatpush2.msra.mxu0 0.0
    %221 = vmatprep.subr.mxu0 0.0
    %222 = vmatpush2.msra.mxu0 0.0
    %223 = vmatprep.subr.mxu0 0.0
    %224 = vmatpush2.msra.mxu0 0.0
    %225 = vmatprep.subr.mxu0 0.0
    %226 = vmatpush2.msra.mxu0 0.0
    %227 = vmatprep.subr.mxu0 0.0
    %228 = vmatpush2.msra.mxu0 0.0
    %229 = vmatprep.subr.mxu0 0.0
    %230 = vmatpush2.msra.mxu0 0.0
    %231 = vmatprep.subr.mxu0 0.0
    %232 = vmatpush2.msra.mxu0 0.0
    %233 = vmatprep.subr.mxu0 0.0
    %234 = vmatpush2.msra.mxu0 0.0
    %235 = vmatprep.subr.mxu0 0.0
    %236 = vmatpush2.msra.mxu0 0.0
    %237 = vmatprep.subr.mxu0 0.0
    %238 = vmatpush2.msra.mxu0 0.0
    %239 = vmatprep.subr.mxu0 0.0
    %240 = vmatpush2.msra.mxu0 0.0
    %241 = vmatprep.mubr.f32.mxu0 0.0
    %242 = vmatmul.mubr.f32.gmra.mxu0 %v73
    %v243 = vpop.f32.mrf.mxu0
    %v244 = vadd.f32 0.0, %v243
    %v245 = vpop.f32.mrf.mxu0
    %246 = vmatprep.mubr.f32.mxu0 0.0
    %247 = vmatmul.mubr.f32.gmra.mxu0 %v76
    %v248 = vpop.f32.mrf.mxu0
    %v249 = vadd.f32 0.0, %v248
    %v250 = vpop.f32.mrf.mxu0
    %251 = vmatprep.mubr.f32.mxu0 0.0
    %252 = vmatmul.mubr.f32.gmra.mxu0 %v79
    %v253 = vpop.f32.mrf.mxu0
    %v254 = vadd.f32 0.0, %v253
    %v255 = vpop.f32.mrf.mxu0
    %256 = vmatprep.mubr.f32.mxu0 0.0
    %257 = vmatmul.mubr.f32.gmra.mxu0 %v82
    %v258 = vpop.f32.mrf.mxu0
    %v259 = vadd.f32 0.0, %v258
    %v260 = vpop.f32.mrf.mxu0
    %261 = vdwg.mxu0
    %262 = vst.msk [vmem:[#allocation2 + $0x40] sm:$0xff] %vm71, %v244
    %263 = vst.msk [vmem:[#allocation2 + $0x48] sm:$0xff] %vm71, %v249
    %264 = vst.msk [vmem:[#allocation2 + $0x50] sm:$0xff] %vm71, %v254
    %265 = vst.msk [vmem:[#allocation2 + $0x58] sm:$0xff] %vm71, %v259
    %v266 = vld [vmem:[%s3] sm:$0xff]
    %v267 = vld [vmem:[%s3 + $0x8] sm:$0xff]
    %v268 = vld [vmem:[#allocation2] sm:$0xff]
    %v269 = vld [vmem:[#allocation2 + $0x8] sm:$0xff]
    %v270 = vld [vmem:[#allocation2 + $0x10] sm:$0xff]
    %v271 = vld [vmem:[#allocation2 + $0x18] sm:$0xff]
    %v272 = vld [vmem:[#allocation2 + $0x20] sm:$0xff]
    %v273 = vld [vmem:[#allocation2 + $0x28] sm:$0xff]
    %v274 = vld [vmem:[#allocation2 + $0x30] sm:$0xff]
    %v275 = vld [vmem:[#allocation2 + $0x38] sm:$0xff]
    %v276 = vld [vmem:[#allocation2 + $0x40] sm:$0xff]
    %v277 = vld [vmem:[#allocation2 + $0x48] sm:$0xff]
    %v278 = vld [vmem:[#allocation2 + $0x50] sm:$0xff]
    %v279 = vld [vmem:[#allocation2 + $0x58] sm:$0xff]
    %v280 = vld [vmem:[%s4] sm:$0xff]
    %v281 = vld [vmem:[%s4 + $0x8] sm:$0xff]
    %283 = vset.pattern.permute.xlu0 0
    %284 = vperm.xlu0 %283, %v280
    %v285 = vpop.permute.xlu0 %284
    %288 = vset.pattern.permute.xlu0 0
    %289 = vperm.xlu0 %288, %v281
    %v290 = vpop.permute.xlu0 %289
    %vm292 = vcmask 785408
    %v294 = vsel %vm292, %v266, 0
    %v297 = vsel %vm292, %v267, 0
    %299 = vmatprep.subr.mxu0 0.0
    %300 = vmatpush1.msra.mxu0 0.0
    %301 = vmatprep.subr.mxu0 0.0
    %302 = vmatpush1.msra.mxu0 0.0
    %303 = vmatprep.subr.mxu0 0.0
    %304 = vmatpush1.msra.mxu0 0.0
    %305 = vmatprep.subr.mxu0 0.0
    %306 = vmatpush1.msra.mxu0 0.0
    %307 = vmatprep.subr.mxu0 0.0
    %308 = vmatpush1.msra.mxu0 %v279
    %309 = vmatprep.subr.mxu0 0.0
    %310 = vmatpush1.msra.mxu0 %v278
    %311 = vmatprep.subr.mxu0 0.0
    %312 = vmatpush1.msra.mxu0 %v277
    %313 = vmatprep.subr.mxu0 0.0
    %314 = vmatpush1.msra.mxu0 %v276
    %315 = vmatprep.subr.mxu0 0.0
    %316 = vmatpush1.msra.mxu0 %v275
    %317 = vmatprep.subr.mxu0 0.0
    %318 = vmatpush1.msra.mxu0 %v274
    %319 = vmatprep.subr.mxu0 0.0
    %320 = vmatpush1.msra.mxu0 %v273
    %321 = vmatprep.subr.mxu0 0.0
    %322 = vmatpush1.msra.mxu0 %v272
    %323 = vmatprep.subr.mxu0 0.0
    %324 = vmatpush1.msra.mxu0 %v271
    %325 = vmatprep.subr.mxu0 0.0
    %326 = vmatpush1.msra.mxu0 %v270
    %327 = vmatprep.subr.mxu0 0.0
    %328 = vmatpush1.msra.mxu0 %v269
    %329 = vmatprep.subr.mxu0 0.0
    %330 = vmatpush1.msra.mxu0 %v268
    %331 = vmatprep.subr.mxu0 0.0
    %332 = vmatpush2.msra.mxu0 0.0
    %333 = vmatprep.subr.mxu0 0.0
    %334 = vmatpush2.msra.mxu0 0.0
    %335 = vmatprep.subr.mxu0 0.0
    %336 = vmatpush2.msra.mxu0 0.0
    %337 = vmatprep.subr.mxu0 0.0
    %338 = vmatpush2.msra.mxu0 0.0
    %339 = vmatprep.subr.mxu0 0.0
    %340 = vmatpush2.msra.mxu0 0.0
    %341 = vmatprep.subr.mxu0 0.0
    %342 = vmatpush2.msra.mxu0 0.0
    %343 = vmatprep.subr.mxu0 0.0
    %344 = vmatpush2.msra.mxu0 0.0
    %345 = vmatprep.subr.mxu0 0.0
    %346 = vmatpush2.msra.mxu0 0.0
    %347 = vmatprep.subr.mxu0 0.0
    %348 = vmatpush2.msra.mxu0 0.0
    %349 = vmatprep.subr.mxu0 0.0
    %350 = vmatpush2.msra.mxu0 0.0
    %351 = vmatprep.subr.mxu0 0.0
    %352 = vmatpush2.msra.mxu0 0.0
    %353 = vmatprep.subr.mxu0 0.0
    %354 = vmatpush2.msra.mxu0 0.0
    %355 = vmatprep.subr.mxu0 0.0
    %356 = vmatpush2.msra.mxu0 0.0
    %357 = vmatprep.subr.mxu0 0.0
    %358 = vmatpush2.msra.mxu0 0.0
    %359 = vmatprep.subr.mxu0 0.0
    %360 = vmatpush2.msra.mxu0 0.0
    %361 = vmatprep.subr.mxu0 0.0
    %362 = vmatpush2.msra.mxu0 0.0
    %363 = vmatprep.mubr.f32.mxu0 0.0
    %364 = vmatmul.mubr.f32.gmra.mxu0 %v294
    %v365 = vpop.f32.mrf.mxu0
    %v366 = vadd.f32 %v285, %v365
    %v367 = vpop.f32.mrf.mxu0
    %368 = vmatprep.mubr.f32.mxu0 0.0
    %369 = vmatmul.mubr.f32.gmra.mxu0 %v297
    %v370 = vpop.f32.mrf.mxu0
    %v371 = vadd.f32 %v290, %v370
    %v372 = vpop.f32.mrf.mxu0
    %373 = vdwg.mxu0
    %v374 = vmax.f32 %v366, 0.0
    %v375 = vmax.f32 %v371, 0.0
    %v376 = vld [vmem:[%s5] sm:$0xff]
    %v377 = vld [vmem:[%s5 + $0x8] sm:$0xff]
    %379 = vset.pattern.permute.xlu0 0
    %380 = vperm.xlu0 %379, %v376
    %v381 = vpop.permute.xlu0 %380
    %384 = vset.pattern.permute.xlu0 0
    %385 = vperm.xlu0 %384, %v377
    %v386 = vpop.permute.xlu0 %385
    %v388 = vmul.f32 %v374, %v381
    %v389 = vmul.f32 %v375, %v386
    %v390 = vld [vmem:[%s6] sm:$0xff]
    %v391 = vld [vmem:[%s6 + $0x8] sm:$0xff]
    %393 = vset.pattern.permute.xlu0 0
    %394 = vperm.xlu0 %393, %v390
    %v395 = vpop.permute.xlu0 %394
    %398 = vset.pattern.permute.xlu0 0
    %399 = vperm.xlu0 %398, %v391
    %v400 = vpop.permute.xlu0 %399
    %v402 = vadd.f32 %v388, %v395
    %v403 = vadd.f32 %v389, %v400
    %v405 = vsel %vm71, %v402, 0
    %v408 = vsel %vm71, %v403, 0
    %410 = vmatprep.subr.mxu0 0.0
    %411 = vmatpush1.msra.mxu0 0.0
    %412 = vmatprep.subr.mxu0 0.0
    %413 = vmatpush1.msra.mxu0 0.0
    %414 = vmatprep.subr.mxu0 0.0
    %415 = vmatpush1.msra.mxu0 0.0
    %416 = vmatprep.subr.mxu0 0.0
    %417 = vmatpush1.msra.mxu0 0.0
    %418 = vmatprep.subr.mxu0 0.0
    %419 = vmatpush1.msra.mxu0 0.0
    %420 = vmatprep.subr.mxu0 0.0
    %421 = vmatpush1.msra.mxu0 0.0
    %422 = vmatprep.subr.mxu0 0.0
    %423 = vmatpush1.msra.mxu0 0.0
    %424 = vmatprep.subr.mxu0 0.0
    %425 = vmatpush1.msra.mxu0 0.0
    %426 = vmatprep.subr.mxu0 0.0
    %427 = vmatpush1.msra.mxu0 0.0
    %428 = vmatprep.subr.mxu0 0.0
    %429 = vmatpush1.msra.mxu0 0.0
    %430 = vmatprep.subr.mxu0 0.0
    %431 = vmatpush1.msra.mxu0 0.0
    %432 = vmatprep.subr.mxu0 0.0
    %433 = vmatpush1.msra.mxu0 0.0
    %434 = vmatprep.subr.mxu0 0.0
    %435 = vmatpush1.msra.mxu0 %v62
    %436 = vmatprep.subr.mxu0 0.0
    %437 = vmatpush1.msra.mxu0 %v61
    %438 = vmatprep.subr.mxu0 0.0
    %439 = vmatpush1.msra.mxu0 %v60
    %440 = vmatprep.subr.mxu0 0.0
    %441 = vmatpush1.msra.mxu0 %v59
    %442 = vmatprep.subr.mxu0 0.0
    %443 = vmatpush2.msra.mxu0 0.0
    %444 = vmatprep.subr.mxu0 0.0
    %445 = vmatpush2.msra.mxu0 0.0
    %446 = vmatprep.subr.mxu0 0.0
    %447 = vmatpush2.msra.mxu0 0.0
    %448 = vmatprep.subr.mxu0 0.0
    %449 = vmatpush2.msra.mxu0 0.0
    %450 = vmatprep.subr.mxu0 0.0
    %451 = vmatpush2.msra.mxu0 0.0
    %452 = vmatprep.subr.mxu0 0.0
    %453 = vmatpush2.msra.mxu0 0.0
    %454 = vmatprep.subr.mxu0 0.0
    %455 = vmatpush2.msra.mxu0 0.0
    %456 = vmatprep.subr.mxu0 0.0
    %457 = vmatpush2.msra.mxu0 0.0
    %458 = vmatprep.subr.mxu0 0.0
    %459 = vmatpush2.msra.mxu0 0.0
    %460 = vmatprep.subr.mxu0 0.0
    %461 = vmatpush2.msra.mxu0 0.0
    %462 = vmatprep.subr.mxu0 0.0
    %463 = vmatpush2.msra.mxu0 0.0
    %464 = vmatprep.subr.mxu0 0.0
    %465 = vmatpush2.msra.mxu0 0.0
    %466 = vmatprep.subr.mxu0 0.0
    %467 = vmatpush2.msra.mxu0 0.0
    %468 = vmatprep.subr.mxu0 0.0
    %469 = vmatpush2.msra.mxu0 0.0
    %470 = vmatprep.subr.mxu0 0.0
    %471 = vmatpush2.msra.mxu0 0.0
    %472 = vmatprep.subr.mxu0 0.0
    %473 = vmatpush2.msra.mxu0 0.0
    %474 = vmatprep.mubr.f32.mxu0 0.0
    %475 = vmatmul.mubr.f32.gmra.mxu0 %v405
    %v476 = vpop.f32.mrf.mxu0
    %v477 = vadd.f32 0.0, %v476
    %v478 = vpop.f32.mrf.mxu0
    %479 = vmatprep.mubr.f32.mxu0 0.0
    %480 = vmatmul.mubr.f32.gmra.mxu0 %v408
    %v481 = vpop.f32.mrf.mxu0
    %v482 = vadd.f32 0.0, %v481
    %v483 = vpop.f32.mrf.mxu0
    %484 = vdwg.mxu0
    %485 = vst.msk [vmem:[#allocation2] sm:$0xff] %vm71, %v477
    %486 = vst.msk [vmem:[#allocation2 + $0x8] sm:$0xff] %vm71, %v482
    %487 = vst.msk [vmem:[#allocation2 + $0x10] sm:$0xff] %vm71, %v402
    %488 = vst.msk [vmem:[#allocation2 + $0x18] sm:$0xff] %vm71, %v403
    %489 = vmatprep.subr.mxu0 0.0
    %490 = vmatpush1.msra.mxu0 0.0
    %491 = vmatprep.subr.mxu0 0.0
    %492 = vmatpush1.msra.mxu0 0.0
    %493 = vmatprep.subr.mxu0 0.0
    %494 = vmatpush1.msra.mxu0 0.0
    %495 = vmatprep.subr.mxu0 0.0
    %496 = vmatpush1.msra.mxu0 0.0
    %497 = vmatprep.subr.mxu0 0.0
    %498 = vmatpush1.msra.mxu0 0.0
    %499 = vmatprep.subr.mxu0 0.0
    %500 = vmatpush1.msra.mxu0 0.0
    %501 = vmatprep.subr.mxu0 0.0
    %502 = vmatpush1.msra.mxu0 0.0
    %503 = vmatprep.subr.mxu0 0.0
    %504 = vmatpush1.msra.mxu0 0.0
    %505 = vmatprep.subr.mxu0 0.0
    %506 = vmatpush1.msra.mxu0 0.0
    %507 = vmatprep.subr.mxu0 0.0
    %508 = vmatpush1.msra.mxu0 0.0
    %509 = vmatprep.subr.mxu0 0.0
    %510 = vmatpush1.msra.mxu0 0.0
    %511 = vmatprep.subr.mxu0 0.0
    %512 = vmatpush1.msra.mxu0 0.0
    %513 = vmatprep.subr.mxu0 0.0
    %514 = vmatpush1.msra.mxu0 %v66
    %515 = vmatprep.subr.mxu0 0.0
    %516 = vmatpush1.msra.mxu0 %v65
    %517 = vmatprep.subr.mxu0 0.0
    %518 = vmatpush1.msra.mxu0 %v64
    %519 = vmatprep.subr.mxu0 0.0
    %520 = vmatpush1.msra.mxu0 %v63
    %521 = vmatprep.subr.mxu0 0.0
    %522 = vmatpush2.msra.mxu0 0.0
    %523 = vmatprep.subr.mxu0 0.0
    %524 = vmatpush2.msra.mxu0 0.0
    %525 = vmatprep.subr.mxu0 0.0
    %526 = vmatpush2.msra.mxu0 0.0
    %527 = vmatprep.subr.mxu0 0.0
    %528 = vmatpush2.msra.mxu0 0.0
    %529 = vmatprep.subr.mxu0 0.0
    %530 = vmatpush2.msra.mxu0 0.0
    %531 = vmatprep.subr.mxu0 0.0
    %532 = vmatpush2.msra.mxu0 0.0
    %533 = vmatprep.subr.mxu0 0.0
    %534 = vmatpush2.msra.mxu0 0.0
    %535 = vmatprep.subr.mxu0 0.0
    %536 = vmatpush2.msra.mxu0 0.0
    %537 = vmatprep.subr.mxu0 0.0
    %538 = vmatpush2.msra.mxu0 0.0
    %539 = vmatprep.subr.mxu0 0.0
    %540 = vmatpush2.msra.mxu0 0.0
    %541 = vmatprep.subr.mxu0 0.0
    %542 = vmatpush2.msra.mxu0 0.0
    %543 = vmatprep.subr.mxu0 0.0
    %544 = vmatpush2.msra.mxu0 0.0
    %545 = vmatprep.subr.mxu0 0.0
    %546 = vmatpush2.msra.mxu0 0.0
    %547 = vmatprep.subr.mxu0 0.0
    %548 = vmatpush2.msra.mxu0 0.0
    %549 = vmatprep.subr.mxu0 0.0
    %550 = vmatpush2.msra.mxu0 0.0
    %551 = vmatprep.subr.mxu0 0.0
    %552 = vmatpush2.msra.mxu0 0.0
    %553 = vmatprep.mubr.f32.mxu0 0.0
    %554 = vmatmul.mubr.f32.gmra.mxu0 %v405
    %v555 = vpop.f32.mrf.mxu0
    %v556 = vadd.f32 0.0, %v555
    %v557 = vpop.f32.mrf.mxu0
    %558 = vmatprep.mubr.f32.mxu0 0.0
    %559 = vmatmul.mubr.f32.gmra.mxu0 %v408
    %v560 = vpop.f32.mrf.mxu0
    %v561 = vadd.f32 0.0, %v560
    %v562 = vpop.f32.mrf.mxu0
    %563 = vdwg.mxu0
    %564 = vst.msk [vmem:[#allocation2 + $0x20] sm:$0xff] %vm71, %v556
    %565 = vst.msk [vmem:[#allocation2 + $0x28] sm:$0xff] %vm71, %v561
    %v566 = vld [vmem:[%s7] sm:$0xff]
    %v567 = vld [vmem:[#allocation2] sm:$0xff]
    %v568 = vld [vmem:[#allocation2 + $0x8] sm:$0xff]
    %v569 = vld [vmem:[#allocation2 + $0x10] sm:$0xff]
    %v570 = vld [vmem:[#allocation2 + $0x18] sm:$0xff]
    %v571 = vld [vmem:[#allocation2 + $0x20] sm:$0xff]
    %v572 = vld [vmem:[#allocation2 + $0x28] sm:$0xff]
    %v573 = vld [vmem:[%s8] sm:$0xff]
    %575 = vset.pattern.permute.xlu0 0
    %576 = vperm.xlu0 %575, %v573
    %v577 = vpop.permute.xlu0 %576
    %vm579 = vcmask 392192
    %v581 = vsel %vm579, %v566, 0
    %583 = vmatprep.subr.mxu0 0.0
    %584 = vmatpush1.msra.mxu0 0.0
    %585 = vmatprep.subr.mxu0 0.0
    %586 = vmatpush1.msra.mxu0 0.0
    %587 = vmatprep.subr.mxu0 0.0
    %588 = vmatpush1.msra.mxu0 0.0
    %589 = vmatprep.subr.mxu0 0.0
    %590 = vmatpush1.msra.mxu0 0.0
    %591 = vmatprep.subr.mxu0 0.0
    %592 = vmatpush1.msra.mxu0 0.0
    %593 = vmatprep.subr.mxu0 0.0
    %594 = vmatpush1.msra.mxu0 0.0
    %595 = vmatprep.subr.mxu0 0.0
    %596 = vmatpush1.msra.mxu0 0.0
    %597 = vmatprep.subr.mxu0 0.0
    %598 = vmatpush1.msra.mxu0 0.0
    %599 = vmatprep.subr.mxu0 0.0
    %600 = vmatpush1.msra.mxu0 0.0
    %601 = vmatprep.subr.mxu0 0.0
    %602 = vmatpush1.msra.mxu0 0.0
    %603 = vmatprep.subr.mxu0 0.0
    %604 = vmatpush1.msra.mxu0 %v572
    %605 = vmatprep.subr.mxu0 0.0
    %606 = vmatpush1.msra.mxu0 %v571
    %607 = vmatprep.subr.mxu0 0.0
    %608 = vmatpush1.msra.mxu0 %v570
    %609 = vmatprep.subr.mxu0 0.0
    %610 = vmatpush1.msra.mxu0 %v569
    %611 = vmatprep.subr.mxu0 0.0
    %612 = vmatpush1.msra.mxu0 %v568
    %613 = vmatprep.subr.mxu0 0.0
    %614 = vmatpush1.msra.mxu0 %v567
    %615 = vmatprep.subr.mxu0 0.0
    %616 = vmatpush2.msra.mxu0 0.0
    %617 = vmatprep.subr.mxu0 0.0
    %618 = vmatpush2.msra.mxu0 0.0
    %619 = vmatprep.subr.mxu0 0.0
    %620 = vmatpush2.msra.mxu0 0.0
    %621 = vmatprep.subr.mxu0 0.0
    %622 = vmatpush2.msra.mxu0 0.0
    %623 = vmatprep.subr.mxu0 0.0
    %624 = vmatpush2.msra.mxu0 0.0
    %625 = vmatprep.subr.mxu0 0.0
    %626 = vmatpush2.msra.mxu0 0.0
    %627 = vmatprep.subr.mxu0 0.0
    %628 = vmatpush2.msra.mxu0 0.0
    %629 = vmatprep.subr.mxu0 0.0
    %630 = vmatpush2.msra.mxu0 0.0
    %631 = vmatprep.subr.mxu0 0.0
    %632 = vmatpush2.msra.mxu0 0.0
    %633 = vmatprep.subr.mxu0 0.0
    %634 = vmatpush2.msra.mxu0 0.0
    %635 = vmatprep.subr.mxu0 0.0
    %636 = vmatpush2.msra.mxu0 0.0
    %637 = vmatprep.subr.mxu0 0.0
    %638 = vmatpush2.msra.mxu0 0.0
    %639 = vmatprep.subr.mxu0 0.0
    %640 = vmatpush2.msra.mxu0 0.0
    %641 = vmatprep.subr.mxu0 0.0
    %642 = vmatpush2.msra.mxu0 0.0
    %643 = vmatprep.subr.mxu0 0.0
    %644 = vmatpush2.msra.mxu0 0.0
    %645 = vmatprep.subr.mxu0 0.0
    %646 = vmatpush2.msra.mxu0 0.0
    %647 = vmatprep.mubr.f32.mxu0 0.0
    %648 = vmatmul.mubr.f32.gmra.mxu0 %v581
    %v649 = vpop.f32.mrf.mxu0
    %v650 = vadd.f32 %v577, %v649
    %v651 = vpop.f32.mrf.mxu0
    %652 = vdwg.mxu0
    %v653 = vmax.f32 %v650, 0.0
    %v654 = vld [vmem:[%s9] sm:$0xff]
    %656 = vset.pattern.permute.xlu0 0
    %657 = vperm.xlu0 %656, %v654
    %v658 = vpop.permute.xlu0 %657
    %v660 = vmul.f32 %v653, %v658
    %v661 = vld [vmem:[%s10] sm:$0xff]
    %663 = vset.pattern.permute.xlu0 0
    %664 = vperm.xlu0 %663, %v661
    %v665 = vpop.permute.xlu0 %664
    %v667 = vadd.f32 %v660, %v665
    %v669 = vsel %vm71, %v667, 0
    %671 = vmatprep.subr.mxu0 0.0
    %672 = vmatpush1.msra.mxu0 0.0
    %673 = vmatprep.subr.mxu0 0.0
    %674 = vmatpush1.msra.mxu0 0.0
    %675 = vmatprep.subr.mxu0 0.0
    %676 = vmatpush1.msra.mxu0 0.0
    %677 = vmatprep.subr.mxu0 0.0
    %678 = vmatpush1.msra.mxu0 0.0
    %679 = vmatprep.subr.mxu0 0.0
    %680 = vmatpush1.msra.mxu0 0.0
    %681 = vmatprep.subr.mxu0 0.0
    %682 = vmatpush1.msra.mxu0 0.0
    %683 = vmatprep.subr.mxu0 0.0
    %684 = vmatpush1.msra.mxu0 0.0
    %685 = vmatprep.subr.mxu0 0.0
    %686 = vmatpush1.msra.mxu0 0.0
    %687 = vmatprep.subr.mxu0 0.0
    %688 = vmatpush1.msra.mxu0 0.0
    %689 = vmatprep.subr.mxu0 0.0
    %690 = vmatpush1.msra.mxu0 0.0
    %691 = vmatprep.subr.mxu0 0.0
    %692 = vmatpush1.msra.mxu0 0.0
    %693 = vmatprep.subr.mxu0 0.0
    %694 = vmatpush1.msra.mxu0 0.0
    %695 = vmatprep.subr.mxu0 0.0
    %696 = vmatpush1.msra.mxu0 %v62
    %697 = vmatprep.subr.mxu0 0.0
    %698 = vmatpush1.msra.mxu0 %v61
    %699 = vmatprep.subr.mxu0 0.0
    %700 = vmatpush1.msra.mxu0 %v60
    %701 = vmatprep.subr.mxu0 0.0
    %702 = vmatpush1.msra.mxu0 %v59
    %703 = vmatprep.subr.mxu0 0.0
    %704 = vmatpush2.msra.mxu0 0.0
    %705 = vmatprep.subr.mxu0 0.0
    %706 = vmatpush2.msra.mxu0 0.0
    %707 = vmatprep.subr.mxu0 0.0
    %708 = vmatpush2.msra.mxu0 0.0
    %709 = vmatprep.subr.mxu0 0.0
    %710 = vmatpush2.msra.mxu0 0.0
    %711 = vmatprep.subr.mxu0 0.0
    %712 = vmatpush2.msra.mxu0 0.0
    %713 = vmatprep.subr.mxu0 0.0
    %714 = vmatpush2.msra.mxu0 0.0
    %715 = vmatprep.subr.mxu0 0.0
    %716 = vmatpush2.msra.mxu0 0.0
    %717 = vmatprep.subr.mxu0 0.0
    %718 = vmatpush2.msra.mxu0 0.0
    %719 = vmatprep.subr.mxu0 0.0
    %720 = vmatpush2.msra.mxu0 0.0
    %721 = vmatprep.subr.mxu0 0.0
    %722 = vmatpush2.msra.mxu0 0.0
    %723 = vmatprep.subr.mxu0 0.0
    %724 = vmatpush2.msra.mxu0 0.0
    %725 = vmatprep.subr.mxu0 0.0
    %726 = vmatpush2.msra.mxu0 0.0
    %727 = vmatprep.subr.mxu0 0.0
    %728 = vmatpush2.msra.mxu0 0.0
    %729 = vmatprep.subr.mxu0 0.0
    %730 = vmatpush2.msra.mxu0 0.0
    %731 = vmatprep.subr.mxu0 0.0
    %732 = vmatpush2.msra.mxu0 0.0
    %733 = vmatprep.subr.mxu0 0.0
    %734 = vmatpush2.msra.mxu0 0.0
    %735 = vmatprep.mubr.f32.mxu0 0.0
    %736 = vmatmul.mubr.f32.gmra.mxu0 %v669
    %v737 = vpop.f32.mrf.mxu0
    %v738 = vadd.f32 0.0, %v737
    %v739 = vpop.f32.mrf.mxu0
    %740 = vdwg.mxu0
    %741 = vst.msk [vmem:[#allocation2] sm:$0xff] %vm71, %v738
    %742 = vst.msk [vmem:[#allocation2 + $0x8] sm:$0xff] %vm71, %v667
    %743 = vmatprep.subr.mxu0 0.0
    %744 = vmatpush1.msra.mxu0 0.0
    %745 = vmatprep.subr.mxu0 0.0
    %746 = vmatpush1.msra.mxu0 0.0
    %747 = vmatprep.subr.mxu0 0.0
    %748 = vmatpush1.msra.mxu0 0.0
    %749 = vmatprep.subr.mxu0 0.0
    %750 = vmatpush1.msra.mxu0 0.0
    %751 = vmatprep.subr.mxu0 0.0
    %752 = vmatpush1.msra.mxu0 0.0
    %753 = vmatprep.subr.mxu0 0.0
    %754 = vmatpush1.msra.mxu0 0.0
    %755 = vmatprep.subr.mxu0 0.0
    %756 = vmatpush1.msra.mxu0 0.0
    %757 = vmatprep.subr.mxu0 0.0
    %758 = vmatpush1.msra.mxu0 0.0
    %759 = vmatprep.subr.mxu0 0.0
    %760 = vmatpush1.msra.mxu0 0.0
    %761 = vmatprep.subr.mxu0 0.0
    %762 = vmatpush1.msra.mxu0 0.0
    %763 = vmatprep.subr.mxu0 0.0
    %764 = vmatpush1.msra.mxu0 0.0
    %765 = vmatprep.subr.mxu0 0.0
    %766 = vmatpush1.msra.mxu0 0.0
    %767 = vmatprep.subr.mxu0 0.0
    %768 = vmatpush1.msra.mxu0 %v66
    %769 = vmatprep.subr.mxu0 0.0
    %770 = vmatpush1.msra.mxu0 %v65
    %771 = vmatprep.subr.mxu0 0.0
    %772 = vmatpush1.msra.mxu0 %v64
    %773 = vmatprep.subr.mxu0 0.0
    %774 = vmatpush1.msra.mxu0 %v63
    %775 = vmatprep.subr.mxu0 0.0
    %776 = vmatpush2.msra.mxu0 0.0
    %777 = vmatprep.subr.mxu0 0.0
    %778 = vmatpush2.msra.mxu0 0.0
    %779 = vmatprep.subr.mxu0 0.0
    %780 = vmatpush2.msra.mxu0 0.0
    %781 = vmatprep.subr.mxu0 0.0
    %782 = vmatpush2.msra.mxu0 0.0
    %783 = vmatprep.subr.mxu0 0.0
    %784 = vmatpush2.msra.mxu0 0.0
    %785 = vmatprep.subr.mxu0 0.0
    %786 = vmatpush2.msra.mxu0 0.0
    %787 = vmatprep.subr.mxu0 0.0
    %788 = vmatpush2.msra.mxu0 0.0
    %789 = vmatprep.subr.mxu0 0.0
    %790 = vmatpush2.msra.mxu0 0.0
    %791 = vmatprep.subr.mxu0 0.0
    %792 = vmatpush2.msra.mxu0 0.0
    %793 = vmatprep.subr.mxu0 0.0
    %794 = vmatpush2.msra.mxu0 0.0
    %795 = vmatprep.subr.mxu0 0.0
    %796 = vmatpush2.msra.mxu0 0.0
    %797 = vmatprep.subr.mxu0 0.0
    %798 = vmatpush2.msra.mxu0 0.0
    %799 = vmatprep.subr.mxu0 0.0
    %800 = vmatpush2.msra.mxu0 0.0
    %801 = vmatprep.subr.mxu0 0.0
    %802 = vmatpush2.msra.mxu0 0.0
    %803 = vmatprep.subr.mxu0 0.0
    %804 = vmatpush2.msra.mxu0 0.0
    %805 = vmatprep.subr.mxu0 0.0
    %806 = vmatpush2.msra.mxu0 0.0
    %807 = vmatprep.mubr.f32.mxu0 0.0
    %808 = vmatmul.mubr.f32.gmra.mxu0 %v669
    %v809 = vpop.f32.mrf.mxu0
    %v810 = vadd.f32 0.0, %v809
    %v811 = vpop.f32.mrf.mxu0
    %812 = vdwg.mxu0
    %813 = vst.msk [vmem:[#allocation2 + $0x10] sm:$0xff] %vm71, %v810
    %v814 = vld [vmem:[%s11] sm:$0xf]
    %v815 = vld [vmem:[#allocation2] sm:$0xff]
    %v816 = vld [vmem:[#allocation2 + $0x8] sm:$0xff]
    %v817 = vld [vmem:[#allocation2 + $0x10] sm:$0xff]
    %v818 = vld [vmem:[%s12] sm:$0xf]
    %820 = vset.pattern.permute.xlu0 0
    %821 = vperm.xlu0 %820, %v818
    %v822 = vpop.permute.xlu0 %821
    %vm824 = vcmask 195584
    %v826 = vsel %vm824, %v814, 0
    %828 = vmatprep.subr.mxu0 0.0
    %829 = vmatpush1.msra.mxu0 0.0
    %830 = vmatprep.subr.mxu0 0.0
    %831 = vmatpush1.msra.mxu0 0.0
    %832 = vmatprep.subr.mxu0 0.0
    %833 = vmatpush1.msra.mxu0 0.0
    %834 = vmatprep.subr.mxu0 0.0
    %835 = vmatpush1.msra.mxu0 0.0
    %836 = vmatprep.subr.mxu0 0.0
    %837 = vmatpush1.msra.mxu0 0.0
    %838 = vmatprep.subr.mxu0 0.0
    %839 = vmatpush1.msra.mxu0 0.0
    %840 = vmatprep.subr.mxu0 0.0
    %841 = vmatpush1.msra.mxu0 0.0
    %842 = vmatprep.subr.mxu0 0.0
    %843 = vmatpush1.msra.mxu0 0.0
    %844 = vmatprep.subr.mxu0 0.0
    %845 = vmatpush1.msra.mxu0 0.0
    %846 = vmatprep.subr.mxu0 0.0
    %847 = vmatpush1.msra.mxu0 0.0
    %848 = vmatprep.subr.mxu0 0.0
    %849 = vmatpush1.msra.mxu0 0.0
    %850 = vmatprep.subr.mxu0 0.0
    %851 = vmatpush1.msra.mxu0 0.0
    %852 = vmatprep.subr.mxu0 0.0
    %853 = vmatpush1.msra.mxu0 0.0
    %854 = vmatprep.subr.mxu0 0.0
    %855 = vmatpush1.msra.mxu0 %v817
    %856 = vmatprep.subr.mxu0 0.0
    %857 = vmatpush1.msra.mxu0 %v816
    %858 = vmatprep.subr.mxu0 0.0
    %859 = vmatpush1.msra.mxu0 %v815
    %860 = vmatprep.subr.mxu0 0.0
    %861 = vmatpush2.msra.mxu0 0.0
    %862 = vmatprep.subr.mxu0 0.0
    %863 = vmatpush2.msra.mxu0 0.0
    %864 = vmatprep.subr.mxu0 0.0
    %865 = vmatpush2.msra.mxu0 0.0
    %866 = vmatprep.subr.mxu0 0.0
    %867 = vmatpush2.msra.mxu0 0.0
    %868 = vmatprep.subr.mxu0 0.0
    %869 = vmatpush2.msra.mxu0 0.0
    %870 = vmatprep.subr.mxu0 0.0
    %871 = vmatpush2.msra.mxu0 0.0
    %872 = vmatprep.subr.mxu0 0.0
    %873 = vmatpush2.msra.mxu0 0.0
    %874 = vmatprep.subr.mxu0 0.0
    %875 = vmatpush2.msra.mxu0 0.0
    %876 = vmatprep.subr.mxu0 0.0
    %877 = vmatpush2.msra.mxu0 0.0
    %878 = vmatprep.subr.mxu0 0.0
    %879 = vmatpush2.msra.mxu0 0.0
    %880 = vmatprep.subr.mxu0 0.0
    %881 = vmatpush2.msra.mxu0 0.0
    %882 = vmatprep.subr.mxu0 0.0
    %883 = vmatpush2.msra.mxu0 0.0
    %884 = vmatprep.subr.mxu0 0.0
    %885 = vmatpush2.msra.mxu0 0.0
    %886 = vmatprep.subr.mxu0 0.0
    %887 = vmatpush2.msra.mxu0 0.0
    %888 = vmatprep.subr.mxu0 0.0
    %889 = vmatpush2.msra.mxu0 0.0
    %890 = vmatprep.subr.mxu0 0.0
    %891 = vmatpush2.msra.mxu0 0.0
    %892 = vmatprep.mubr.f32.mxu0 0.0
    %893 = vmatmul.mubr.f32.gmra.mxu0 %v826
    %v894 = vpop.f32.mrf.mxu0
    %v895 = vadd.f32 %v822, %v894
    %v896 = vpop.f32.mrf.mxu0
    %897 = vdwg.mxu0
    %v898 = vmax.f32 %v895, 0.0
    %v899 = vld [vmem:[%s13] sm:$0xf]
    %901 = vset.pattern.permute.xlu0 0
    %902 = vperm.xlu0 %901, %v899
    %v903 = vpop.permute.xlu0 %902
    %v905 = vmul.f32 %v898, %v903
    %v906 = vld [vmem:[%s14] sm:$0xf]
    %908 = vset.pattern.permute.xlu0 0
    %909 = vperm.xlu0 %908, %v906
    %v910 = vpop.permute.xlu0 %909
    %v912 = vadd.f32 %v905, %v910
    %v914 = vsel %vm71, %v912, 0
    %916 = vmatprep.subr.mxu0 0.0
    %917 = vmatpush1.msra.mxu0 0.0
    %918 = vmatprep.subr.mxu0 0.0
    %919 = vmatpush1.msra.mxu0 0.0
    %920 = vmatprep.subr.mxu0 0.0
    %921 = vmatpush1.msra.mxu0 0.0
    %922 = vmatprep.subr.mxu0 0.0
    %923 = vmatpush1.msra.mxu0 0.0
    %924 = vmatprep.subr.mxu0 0.0
    %925 = vmatpush1.msra.mxu0 0.0
    %926 = vmatprep.subr.mxu0 0.0
    %927 = vmatpush1.msra.mxu0 0.0
    %928 = vmatprep.subr.mxu0 0.0
    %929 = vmatpush1.msra.mxu0 0.0
    %930 = vmatprep.subr.mxu0 0.0
    %931 = vmatpush1.msra.mxu0 0.0
    %932 = vmatprep.subr.mxu0 0.0
    %933 = vmatpush1.msra.mxu0 0.0
    %934 = vmatprep.subr.mxu0 0.0
    %935 = vmatpush1.msra.mxu0 0.0
    %936 = vmatprep.subr.mxu0 0.0
    %937 = vmatpush1.msra.mxu0 0.0
    %938 = vmatprep.subr.mxu0 0.0
    %939 = vmatpush1.msra.mxu0 0.0
    %940 = vmatprep.subr.mxu0 0.0
    %941 = vmatpush1.msra.mxu0 %v66
    %942 = vmatprep.subr.mxu0 0.0
    %943 = vmatpush1.msra.mxu0 %v65
    %944 = vmatprep.subr.mxu0 0.0
    %945 = vmatpush1.msra.mxu0 %v64
    %946 = vmatprep.subr.mxu0 0.0
    %947 = vmatpush1.msra.mxu0 %v63
    %948 = vmatprep.subr.mxu0 0.0
    %949 = vmatpush2.msra.mxu0 0.0
    %950 = vmatprep.subr.mxu0 0.0
    %951 = vmatpush2.msra.mxu0 0.0
    %952 = vmatprep.subr.mxu0 0.0
    %953 = vmatpush2.msra.mxu0 0.0
    %954 = vmatprep.subr.mxu0 0.0
    %955 = vmatpush2.msra.mxu0 0.0
    %956 = vmatprep.subr.mxu0 0.0
    %957 = vmatpush2.msra.mxu0 0.0
    %958 = vmatprep.subr.mxu0 0.0
    %959 = vmatpush2.msra.mxu0 0.0
    %960 = vmatprep.subr.mxu0 0.0
    %961 = vmatpush2.msra.mxu0 0.0
    %962 = vmatprep.subr.mxu0 0.0
    %963 = vmatpush2.msra.mxu0 0.0
    %964 = vmatprep.subr.mxu0 0.0
    %965 = vmatpush2.msra.mxu0 0.0
    %966 = vmatprep.subr.mxu0 0.0
    %967 = vmatpush2.msra.mxu0 0.0
    %968 = vmatprep.subr.mxu0 0.0
    %969 = vmatpush2.msra.mxu0 0.0
    %970 = vmatprep.subr.mxu0 0.0
    %971 = vmatpush2.msra.mxu0 0.0
    %972 = vmatprep.subr.mxu0 0.0
    %973 = vmatpush2.msra.mxu0 0.0
    %974 = vmatprep.subr.mxu0 0.0
    %975 = vmatpush2.msra.mxu0 0.0
    %976 = vmatprep.subr.mxu0 0.0
    %977 = vmatpush2.msra.mxu0 0.0
    %978 = vmatprep.subr.mxu0 0.0
    %979 = vmatpush2.msra.mxu0 0.0
    %980 = vmatprep.mubr.f32.mxu0 0.0
    %981 = vmatmul.mubr.f32.gmra.mxu0 %v914
    %v982 = vpop.f32.mrf.mxu0
    %v983 = vadd.f32 0.0, %v982
    %v984 = vpop.f32.mrf.mxu0
    %985 = vdwg.mxu0
    %v987 = vsel %vm71, %v983, 0
    %989 = vmatprep.subr.mxu0 0.0
    %990 = vmatpush1.msra.mxu0 0.0
    %991 = vmatprep.subr.mxu0 0.0
    %992 = vmatpush1.msra.mxu0 0.0
    %993 = vmatprep.subr.mxu0 0.0
    %994 = vmatpush1.msra.mxu0 0.0
    %995 = vmatprep.subr.mxu0 0.0
    %996 = vmatpush1.msra.mxu0 0.0
    %997 = vmatprep.subr.mxu0 0.0
    %998 = vmatpush1.msra.mxu0 0.0
    %999 = vmatprep.subr.mxu0 0.0
    %1000 = vmatpush1.msra.mxu0 0.0
    %1001 = vmatprep.subr.mxu0 0.0
    %1002 = vmatpush1.msra.mxu0 0.0
    %1003 = vmatprep.subr.mxu0 0.0
    %1004 = vmatpush1.msra.mxu0 0.0
    %1005 = vmatprep.subr.mxu0 0.0
    %1006 = vmatpush1.msra.mxu0 0.0
    %1007 = vmatprep.subr.mxu0 0.0
    %1008 = vmatpush1.msra.mxu0 0.0
    %1009 = vmatprep.subr.mxu0 0.0
    %1010 = vmatpush1.msra.mxu0 0.0
    %1011 = vmatprep.subr.mxu0 0.0
    %1012 = vmatpush1.msra.mxu0 0.0
    %1013 = vmatprep.subr.mxu0 0.0
    %1014 = vmatpush1.msra.mxu0 %v66
    %1015 = vmatprep.subr.mxu0 0.0
    %1016 = vmatpush1.msra.mxu0 %v65
    %1017 = vmatprep.subr.mxu0 0.0
    %1018 = vmatpush1.msra.mxu0 %v64
    %1019 = vmatprep.subr.mxu0 0.0
    %1020 = vmatpush1.msra.mxu0 %v63
    %1021 = vmatprep.subr.mxu0 0.0
    %1022 = vmatpush2.msra.mxu0 0.0
    %1023 = vmatprep.subr.mxu0 0.0
    %1024 = vmatpush2.msra.mxu0 0.0
    %1025 = vmatprep.subr.mxu0 0.0
    %1026 = vmatpush2.msra.mxu0 0.0
    %1027 = vmatprep.subr.mxu0 0.0
    %1028 = vmatpush2.msra.mxu0 0.0
    %1029 = vmatprep.subr.mxu0 0.0
    %1030 = vmatpush2.msra.mxu0 0.0
    %1031 = vmatprep.subr.mxu0 0.0
    %1032 = vmatpush2.msra.mxu0 0.0
    %1033 = vmatprep.subr.mxu0 0.0
    %1034 = vmatpush2.msra.mxu0 0.0
    %1035 = vmatprep.subr.mxu0 0.0
    %1036 = vmatpush2.msra.mxu0 0.0
    %1037 = vmatprep.subr.mxu0 0.0
    %1038 = vmatpush2.msra.mxu0 0.0
    %1039 = vmatprep.subr.mxu0 0.0
    %1040 = vmatpush2.msra.mxu0 0.0
    %1041 = vmatprep.subr.mxu0 0.0
    %1042 = vmatpush2.msra.mxu0 0.0
    %1043 = vmatprep.subr.mxu0 0.0
    %1044 = vmatpush2.msra.mxu0 0.0
    %1045 = vmatprep.subr.mxu0 0.0
    %1046 = vmatpush2.msra.mxu0 0.0
    %1047 = vmatprep.subr.mxu0 0.0
    %1048 = vmatpush2.msra.mxu0 0.0
    %1049 = vmatprep.subr.mxu0 0.0
    %1050 = vmatpush2.msra.mxu0 0.0
    %1051 = vmatprep.subr.mxu0 0.0
    %1052 = vmatpush2.msra.mxu0 0.0
    %1053 = vmatprep.mubr.f32.mxu0 0.0
    %1054 = vmatmul.mubr.f32.gmra.mxu0 %v987
    %v1055 = vpop.f32.mrf.mxu0
    %v1056 = vadd.f32 0.0, %v1055
    %v1057 = vpop.f32.mrf.mxu0
    %1058 = vdwg.mxu0
    %1059 = vmatprep.subr.mxu0 0.0
    %1060 = vmatpush1.msra.mxu0 0.0
    %1061 = vmatprep.subr.mxu0 0.0
    %1062 = vmatpush1.msra.mxu0 0.0
    %1063 = vmatprep.subr.mxu0 0.0
    %1064 = vmatpush1.msra.mxu0 0.0
    %1065 = vmatprep.subr.mxu0 0.0
    %1066 = vmatpush1.msra.mxu0 0.0
    %1067 = vmatprep.subr.mxu0 0.0
    %1068 = vmatpush1.msra.mxu0 0.0
    %1069 = vmatprep.subr.mxu0 0.0
    %1070 = vmatpush1.msra.mxu0 0.0
    %1071 = vmatprep.subr.mxu0 0.0
    %1072 = vmatpush1.msra.mxu0 0.0
    %1073 = vmatprep.subr.mxu0 0.0
    %1074 = vmatpush1.msra.mxu0 0.0
    %1075 = vmatprep.subr.mxu0 0.0
    %1076 = vmatpush1.msra.mxu0 0.0
    %1077 = vmatprep.subr.mxu0 0.0
    %1078 = vmatpush1.msra.mxu0 0.0
    %1079 = vmatprep.subr.mxu0 0.0
    %1080 = vmatpush1.msra.mxu0 0.0
    %1081 = vmatprep.subr.mxu0 0.0
    %1082 = vmatpush1.msra.mxu0 0.0
    %1083 = vmatprep.subr.mxu0 0.0
    %1084 = vmatpush1.msra.mxu0 %v62
    %1085 = vmatprep.subr.mxu0 0.0
    %1086 = vmatpush1.msra.mxu0 %v61
    %1087 = vmatprep.subr.mxu0 0.0
    %1088 = vmatpush1.msra.mxu0 %v60
    %1089 = vmatprep.subr.mxu0 0.0
    %1090 = vmatpush1.msra.mxu0 %v59
    %1091 = vmatprep.subr.mxu0 0.0
    %1092 = vmatpush2.msra.mxu0 0.0
    %1093 = vmatprep.subr.mxu0 0.0
    %1094 = vmatpush2.msra.mxu0 0.0
    %1095 = vmatprep.subr.mxu0 0.0
    %1096 = vmatpush2.msra.mxu0 0.0
    %1097 = vmatprep.subr.mxu0 0.0
    %1098 = vmatpush2.msra.mxu0 0.0
    %1099 = vmatprep.subr.mxu0 0.0
    %1100 = vmatpush2.msra.mxu0 0.0
    %1101 = vmatprep.subr.mxu0 0.0
    %1102 = vmatpush2.msra.mxu0 0.0
    %1103 = vmatprep.subr.mxu0 0.0
    %1104 = vmatpush2.msra.mxu0 0.0
    %1105 = vmatprep.subr.mxu0 0.0
    %1106 = vmatpush2.msra.mxu0 0.0
    %1107 = vmatprep.subr.mxu0 0.0
    %1108 = vmatpush2.msra.mxu0 0.0
    %1109 = vmatprep.subr.mxu0 0.0
    %1110 = vmatpush2.msra.mxu0 0.0
    %1111 = vmatprep.subr.mxu0 0.0
    %1112 = vmatpush2.msra.mxu0 0.0
    %1113 = vmatprep.subr.mxu0 0.0
    %1114 = vmatpush2.msra.mxu0 0.0
    %1115 = vmatprep.subr.mxu0 0.0
    %1116 = vmatpush2.msra.mxu0 0.0
    %1117 = vmatprep.subr.mxu0 0.0
    %1118 = vmatpush2.msra.mxu0 0.0
    %1119 = vmatprep.subr.mxu0 0.0
    %1120 = vmatpush2.msra.mxu0 0.0
    %1121 = vmatprep.subr.mxu0 0.0
    %1122 = vmatpush2.msra.mxu0 0.0
    %1123 = vmatprep.mubr.f32.mxu0 0.0
    %1124 = vmatmul.mubr.f32.gmra.mxu0 %v914
    %v1125 = vpop.f32.mrf.mxu0
    %v1126 = vadd.f32 0.0, %v1125
    %v1127 = vpop.f32.mrf.mxu0
    %1128 = vdwg.mxu0
    %v1130 = vsel %vm71, %v1126, 0
    %1132 = vmatprep.subr.mxu0 0.0
    %1133 = vmatpush1.msra.mxu0 0.0
    %1134 = vmatprep.subr.mxu0 0.0
    %1135 = vmatpush1.msra.mxu0 0.0
    %1136 = vmatprep.subr.mxu0 0.0
    %1137 = vmatpush1.msra.mxu0 0.0
    %1138 = vmatprep.subr.mxu0 0.0
    %1139 = vmatpush1.msra.mxu0 0.0
    %1140 = vmatprep.subr.mxu0 0.0
    %1141 = vmatpush1.msra.mxu0 0.0
    %1142 = vmatprep.subr.mxu0 0.0
    %1143 = vmatpush1.msra.mxu0 0.0
    %1144 = vmatprep.subr.mxu0 0.0
    %1145 = vmatpush1.msra.mxu0 0.0
    %1146 = vmatprep.subr.mxu0 0.0
    %1147 = vmatpush1.msra.mxu0 0.0
    %1148 = vmatprep.subr.mxu0 0.0
    %1149 = vmatpush1.msra.mxu0 0.0
    %1150 = vmatprep.subr.mxu0 0.0
    %1151 = vmatpush1.msra.mxu0 0.0
    %1152 = vmatprep.subr.mxu0 0.0
    %1153 = vmatpush1.msra.mxu0 0.0
    %1154 = vmatprep.subr.mxu0 0.0
    %1155 = vmatpush1.msra.mxu0 0.0
    %1156 = vmatprep.subr.mxu0 0.0
    %1157 = vmatpush1.msra.mxu0 %v62
    %1158 = vmatprep.subr.mxu0 0.0
    %1159 = vmatpush1.msra.mxu0 %v61
    %1160 = vmatprep.subr.mxu0 0.0
    %1161 = vmatpush1.msra.mxu0 %v60
    %1162 = vmatprep.subr.mxu0 0.0
    %1163 = vmatpush1.msra.mxu0 %v59
    %1164 = vmatprep.subr.mxu0 0.0
    %1165 = vmatpush2.msra.mxu0 0.0
    %1166 = vmatprep.subr.mxu0 0.0
    %1167 = vmatpush2.msra.mxu0 0.0
    %1168 = vmatprep.subr.mxu0 0.0
    %1169 = vmatpush2.msra.mxu0 0.0
    %1170 = vmatprep.subr.mxu0 0.0
    %1171 = vmatpush2.msra.mxu0 0.0
    %1172 = vmatprep.subr.mxu0 0.0
    %1173 = vmatpush2.msra.mxu0 0.0
    %1174 = vmatprep.subr.mxu0 0.0
    %1175 = vmatpush2.msra.mxu0 0.0
    %1176 = vmatprep.subr.mxu0 0.0
    %1177 = vmatpush2.msra.mxu0 0.0
    %1178 = vmatprep.subr.mxu0 0.0
    %1179 = vmatpush2.msra.mxu0 0.0
    %1180 = vmatprep.subr.mxu0 0.0
    %1181 = vmatpush2.msra.mxu0 0.0
    %1182 = vmatprep.subr.mxu0 0.0
    %1183 = vmatpush2.msra.mxu0 0.0
    %1184 = vmatprep.subr.mxu0 0.0
    %1185 = vmatpush2.msra.mxu0 0.0
    %1186 = vmatprep.subr.mxu0 0.0
    %1187 = vmatpush2.msra.mxu0 0.0
    %1188 = vmatprep.subr.mxu0 0.0
    %1189 = vmatpush2.msra.mxu0 0.0
    %1190 = vmatprep.subr.mxu0 0.0
    %1191 = vmatpush2.msra.mxu0 0.0
    %1192 = vmatprep.subr.mxu0 0.0
    %1193 = vmatpush2.msra.mxu0 0.0
    %1194 = vmatprep.subr.mxu0 0.0
    %1195 = vmatpush2.msra.mxu0 0.0
    %1196 = vmatprep.mubr.f32.mxu0 0.0
    %1197 = vmatmul.mubr.f32.gmra.mxu0 %v1130
    %v1198 = vpop.f32.mrf.mxu0
    %v1199 = vadd.f32 0.0, %v1198
    %v1200 = vpop.f32.mrf.mxu0
    %1201 = vdwg.mxu0
    %v1202 = vld [vmem:[%s15] sm:$0xf]
    %1204 = vset.pattern.permute.xlu0 0
    %1205 = vperm.xlu0 %1204, %v1202
    %v1206 = vpop.permute.xlu0 %1205
    %v1208 = vmul.f32 %v1199, %v1206
    %s1209 = scalar_lea.vmem %s15, 4
    %v1210 = vld [vmem:[%s1209] sm:$0xf]
    %1212 = vset.pattern.permute.xlu0 0
    %1213 = vperm.xlu0 %1212, %v1210
    %v1214 = vpop.permute.xlu0 %1213
    %v1216 = vmul.f32 %v1126, %v1214
    %v1217 = vadd.f32 %v1208, %v1216
    %s1218 = scalar_lea.vmem %s15, 8
    %v1219 = vld [vmem:[%s1218] sm:$0xf]
    %1221 = vset.pattern.permute.xlu0 0
    %1222 = vperm.xlu0 %1221, %v1219
    %v1223 = vpop.permute.xlu0 %1222
    %v1225 = vmul.f32 %v912, %v1223
    %v1226 = vadd.f32 %v1217, %v1225
    %s1227 = scalar_lea.vmem %s15, 12
    %v1228 = vld [vmem:[%s1227] sm:$0xf]
    %1230 = vset.pattern.permute.xlu0 0
    %1231 = vperm.xlu0 %1230, %v1228
    %v1232 = vpop.permute.xlu0 %1231
    %v1234 = vmul.f32 %v983, %v1232
    %v1235 = vadd.f32 %v1226, %v1234
    %s1236 = scalar_lea.vmem %s15, 16
    %v1237 = vld [vmem:[%s1236] sm:$0xf]
    %1239 = vset.pattern.permute.xlu0 0
    %1240 = vperm.xlu0 %1239, %v1237
    %v1241 = vpop.permute.xlu0 %1240
    %v1243 = vmul.f32 %v1056, %v1241
    %v1244 = vadd.f32 %v1235, %v1243
    %vm1245 = vcmask 257024
    %v1246 = vsel %vm1245, %v1244, 0.0
    %v1247 = vrot.slane %v1246, 4
    %v1248 = vadd.f32 %v1246, %v1247
    %v1249 = vrot.slane %v1248, 2
    %v1250 = vadd.f32 %v1248, %v1249
    %v1251 = vrot.slane %v1250, 1
    %v1252 = vadd.f32 %v1250, %v1251
    %v1253 = vld [vmem:[#allocation3] sm:$0x1]
    %1255 = vset.pattern.permute.xlu0 0
    %1256 = vperm.xlu0 %1255, %v1253
    %v1257 = vpop.permute.xlu0 %1256
    %v1259 = vlaneseq
    %v1260 = vshrl.u32 %v1259, 7
    %v1261 = vsub.s32 0, %v1260
    %v1262 = vrot.slane %v1257, %v1261
    %v1263 = vadd.f32 %v1252, %v1262
    %vm1264 = vcmask 253952
    %1265 = vst.msk [vmem:[#allocation4] sm:$0x1] %vm1264, %v1263
    // Predicated region
    $region70: #{tpu_custom_call.1} parent=1 // pred_check
      _
    $region71: #{tpu_custom_call.1} parent=1 // pred_check_branch
      %1267 = sbr.rel (0) target = $region73
    $region72: #{tpu_custom_call.1} parent=1 // pred_region
      %s1269 = ssub.s32 16, 16
      %1270 = vsyncadd [#allocation5], %s1269
      %s1272 = sshll.u32 [#allocation4], 4
      %s1273 = int_to_ptr.vmem [resolvable:$true] %s1272
      %1275 = dma.vmem_to_hbm [thread:$0]  %s1273, 16, %s17, [#allocation5]
    $region73: #{tpu_custom_call.1} parent=1 // pred_fallthru
      _
    // Predicated region
    $region74: #{tpu_custom_call.1} parent=1 // pred_check
      _
    $region75: #{tpu_custom_call.1} parent=1 // pred_check_branch
      %1277 = sbr.rel (0) target = $region77
    $region76: #{tpu_custom_call.1} parent=1 // pred_region
      %1278 = dma.done [#allocation5], 16
    $region77: #{tpu_custom_call.1} parent=1 // pred_fallthru
      _
    %1279 = vsyncpa [#allocation5], 1

</llo_original>
